<compile_context>
chip_gen: v7x
topology: tpu7x:2x2x1
jax: 0.10.0
libtpu: 0.0.40
codegen_flags: <defaults>
</compile_context>

<pallas_src>
import functools
import math

import jax
import jax.numpy as jnp
from jax.experimental import pallas as pl
from jax.experimental.pallas import tpu as pltpu


def _cdiv(a, b):
    return -(-a // b)


def _round_up(x, m):
    return _cdiv(x, m) * m


def _tpu_kind():
    try:
        return jax.devices()[0].device_kind.lower()
    except Exception:
        return ""


def _default_row_tile():
    kind = _tpu_kind()
    if "v6" in kind:
        return 512   # 128 MiB VMEM; >=512-row tiles needed to approach roofline
    return 256       # v5e / v5p / v7x / unknown


def _default_vmem_limit_bytes():
    kind = _tpu_kind()
    if "v5" in kind or "v6" in kind:
        return 96 * 1024 * 1024   # 128 MiB physical VMEM
    return 48 * 1024 * 1024       # conservative: fits v7x's 64 MiB per-TC VMEM


# ---------------------------------------------------------------------------
# Kernels
# ---------------------------------------------------------------------------

def _layer_norm_rows(y, g, beta, eps, inv_h):
    # One-pass mean / E[y^2] in f32; cross-lane sums -> XLU, rsqrt -> EUP.
    mean = jnp.sum(y, axis=-1, keepdims=True) * inv_h
    ex2 = jnp.sum(y * y, axis=-1, keepdims=True) * inv_h
    var = jnp.maximum(ex2 - mean * mean, 0.0)
    return (y - mean) * jax.lax.rsqrt(var + eps) * g + beta


def _fused_kernel_single_k(h_ref, x_ref, w_ref, b_ref, g_ref, bt_ref, o_ref,
                           *, eps, inv_h, matmul_dtype):
    # Single K step: no accumulator scratch; dot + bias + residual + LayerNorm
    # in one pass.  Activations are cast to the matmul dtype in-kernel.
    y = jnp.dot(h_ref[...].astype(matmul_dtype), w_ref[...],
                preferred_element_type=jnp.float32)
    y = y + b_ref[...] + x_ref[...].astype(jnp.float32)
    o_ref[...] = _layer_norm_rows(y, g_ref[...], bt_ref[...],
                                  eps, inv_h).astype(o_ref.dtype)


def _fused_kernel_multi_k(h_ref, x_ref, w_ref, b_ref, g_ref, bt_ref, o_ref,
                          acc_ref, *, eps, inv_h, matmul_dtype):
    # K-tiled path with an f32 VMEM accumulator that persists across K steps.
    k = pl.program_id(1)
    part = jnp.dot(h_ref[...].astype(matmul_dtype), w_ref[...],
                   preferred_element_type=jnp.float32)

    @pl.when(k == 0)
    def _():
        # Fold residual + bias into the first partial product (no zero fill).
        acc_ref[...] = x_ref[...].astype(jnp.float32) + b_ref[...] + part

    @pl.when(k > 0)
    def _():
        acc_ref[...] += part

    @pl.when(k == pl.num_programs(1) - 1)
    def _():
        o_ref[...] = _layer_norm_rows(acc_ref[...], g_ref[...], bt_ref[...],
                                      eps, inv_h).astype(o_ref.dtype)


# ---------------------------------------------------------------------------
# Wrapper
# ---------------------------------------------------------------------------

def _auto_block_k(I, H, rt, h_bytes, x_bytes, out_bytes, mm_bytes, budget):
    """Pick the largest K tile whose VMEM footprint fits `budget`.

    Prefers the full I (weight resident, single K step); otherwise the largest
    128-multiple divisor of I (so no activation padding is ever needed)."""
    def usage(tk, nk):
        u = tk * H * mm_bytes * (1 if nk == 1 else 2)   # weight (resident if nk==1)
        u += rt * tk * h_bytes * 2                      # activation blocks (x2 buffers)
        u += rt * H * x_bytes * 2                       # residual blocks
        u += rt * H * out_bytes * 2                     # output blocks
        u += (rt * H * 4) if nk > 1 else 0              # f32 accumulator scratch
        u += 3 * H * 4                                  # bias / gamma / beta
        return u

    candidates = [I]
    if I % 128 == 0:
        for tk in range(I - 128, 127, -128):
            if I % tk == 0:
                candidates.append(tk)
    for tk in candidates:
        if usage(tk, _cdiv(I, tk)) <= budget:
            return tk
    return candidates[-1]


def sparse_bert_output(hidden_states, input_tensor, w, b, gamma, beta, *,
                       eps=1e-12, row_tile=None, block_k=None,
                       matmul_dtype=jnp.bfloat16, vmem_limit_bytes=None):
    """Fused dense(I->H) + residual add + LayerNorm.

    hidden_states: (B, S, I)   intermediate activations (cast to matmul_dtype
                               inside the kernel - pass f32 or bf16).
    input_tensor:  (B, S, H)   residual.
    w:             (I, H)      dense weight, transposed vs torch's (out, in).
                               Pre-cast once to matmul_dtype here; pass a bf16
                               weight to skip even that.
    b, gamma, beta: (H,)       dense bias / LayerNorm affine.
    Returns (B, S, H) in input_tensor.dtype.
    """
    B, S, I = hidden_states.shape
    H = input_tensor.shape[-1]
    R = B * S

    if row_tile is None:
        row_tile = _default_row_tile()
    if vmem_limit_bytes is None:
        vmem_limit_bytes = _default_vmem_limit_bytes()

    # Row tile: multiple of 8; guarantee >= 2 row tiles whenever R allows it so
    # both TensorCores get work on megacore parts (v7x).
    if R <= 2 * row_tile:
        rt = _round_up(max(1, _cdiv(R, 2)), 8)
    else:
        rt = _round_up(row_tile, 8)
    num_row_tiles = _cdiv(R, rt)

    # No row padding: the trailing partial row block is handled by Pallas
    # (garbage rows do throwaway per-row work and their stores are masked).
    h2 = hidden_states.reshape(R, I)                 # stays in input dtype
    x2 = input_tensor.reshape(R, H)
    w2 = w if w.dtype == matmul_dtype else w.astype(matmul_dtype)
    b2 = b.reshape(1, H).astype(jnp.float32)
    g2 = gamma.reshape(1, H).astype(jnp.float32)
    bt2 = beta.reshape(1, H).astype(jnp.float32)

    out_dtype = input_tensor.dtype
    h_bytes = jnp.dtype(h2.dtype).itemsize
    x_bytes = jnp.dtype(x2.dtype).itemsize
    out_bytes = jnp.dtype(out_dtype).itemsize
    mm_bytes = jnp.dtype(matmul_dtype).itemsize

    # K (intermediate) tiling.
    if block_k is None:
        budget = int(vmem_limit_bytes * 0.9)
        tk = _auto_block_k(I, H, rt, h_bytes, x_bytes, out_bytes, mm_bytes, budget)
    else:
        tk = _round_up(max(1, min(block_k, I)), 128)
        if tk >= I:
            tk = I                       # single K step: full-I block, no padding
    nk = _cdiv(I, tk)
    I_pad = nk * tk
    if I_pad != I:
        # Only an explicit block_k that does not divide I needs K zero-padding
        # (zeros do not change the matmul result).
        h2 = jnp.pad(h2, ((0, 0), (0, I_pad - I)))
        w2 = jnp.pad(w2, ((0, I_pad - I), (0, 0)))

    kern_single = functools.partial(_fused_kernel_single_k, eps=float(eps),
                                    inv_h=1.0 / H, matmul_dtype=matmul_dtype)
    kern_multi = functools.partial(_fused_kernel_multi_k, eps=float(eps),
                                   inv_h=1.0 / H, matmul_dtype=matmul_dtype)

    def _run(single_buffer_consts):
        def const_spec(shape, index_map):
            # Blocks whose index never changes over the grid: single-buffer so
            # the pipeline does not allocate a second, never-used VMEM copy.
            if single_buffer_consts:
                return pl.BlockSpec(shape, index_map, pipeline_mode=pl.Buffered(1))
            return pl.BlockSpec(shape, index_map)

        if nk == 1:
            grid = (num_row_tiles,)
            in_specs = [
                pl.BlockSpec((rt, I), lambda i: (i, 0)),     # activations
                pl.BlockSpec((rt, H), lambda i: (i, 0)),     # residual
                const_spec((I, H), lambda i: (0, 0)),        # weight (resident)
                const_spec((1, H), lambda i: (0, 0)),        # dense bias
                const_spec((1, H), lambda i: (0, 0)),        # LN gamma
                const_spec((1, H), lambda i: (0, 0)),        # LN beta
            ]
            out_specs = pl.BlockSpec((rt, H), lambda i: (i, 0))
            scratch_shapes = []
            kernel = kern_single
            dim_sem = ("parallel",)
        else:
            grid = (num_row_tiles, nk)
            in_specs = [
                pl.BlockSpec((rt, tk), lambda i, k: (i, k)),  # activations
                pl.BlockSpec((rt, H), lambda i, k: (i, 0)),   # residual
                pl.BlockSpec((tk, H), lambda i, k: (k, 0)),   # weight (streamed)
                const_spec((1, H), lambda i, k: (0, 0)),      # dense bias
                const_spec((1, H), lambda i, k: (0, 0)),      # LN gamma
                const_spec((1, H), lambda i, k: (0, 0)),      # LN beta
            ]
            out_specs = pl.BlockSpec((rt, H), lambda i, k: (i, 0))
            scratch_shapes = [pltpu.VMEM((rt, H), jnp.float32)]
            kernel = kern_multi
            dim_sem = ("parallel", "arbitrary")

        return pl.pallas_call(
            kernel,
            out_shape=jax.ShapeDtypeStruct((R, H), out_dtype),
            grid_spec=pltpu.PrefetchScalarGridSpec(
                num_scalar_prefetch=0,
                grid=grid,
                in_specs=in_specs,
                out_specs=out_specs,
                scratch_shapes=scratch_shapes,
            ),
            compiler_params=pltpu.CompilerParams(
                dimension_semantics=dim_sem,
                vmem_limit_bytes=vmem_limit_bytes),
        )(h2, x2, w2, b2, g2, bt2)

    try:
        out = _run(True)
    except Exception:
        # Fallback if single-buffered pipeline_mode is unsupported in this
        # jax build: identical kernel with default double-buffering.
        out = _run(False)

    return out.reshape(B, S, H)


# ---------------------------------------------------------------------------
# Reference + self test
# ---------------------------------------------------------------------------

def _reference(hidden_states, input_tensor, w, b, gamma, beta, *,
               eps=1e-12, matmul_dtype=jnp.bfloat16):
    y = jnp.einsum("bsi,ih->bsh",
                   hidden_states.astype(matmul_dtype), w.astype(matmul_dtype),
                   preferred_element_type=jnp.float32)
    y = y + b.astype(jnp.float32) + input_tensor.astype(jnp.float32)
    mean = jnp.mean(y, axis=-1, keepdims=True)
    var = jnp.mean((y - mean) ** 2, axis=-1, keepdims=True)
    return (y - mean) * jax.lax.rsqrt(var + eps) * gamma + beta


if __name__ == "__main__":
    # Small BERT-ish config: hidden=128, intermediate=512, batch=2, seq=8.
    B, S, H, I = 2, 8, 128, 512
    eps = 1e-12

    key = jax.random.PRNGKey(0)
    k1, k2, k3, k4 = jax.random.split(key, 4)

    hidden_states = jax.random.normal(k1, (B, S, I), dtype=jnp.float32)
    input_tensor = jax.random.normal(k2, (B, S, H), dtype=jnp.float32)

    # Parameters: SparseLinear(I, H) stored transposed (I, H) vs torch (out, in);
    # SparseLayerNorm(H) with default affine init.
    w = jax.random.normal(k3, (I, H), dtype=jnp.float32) * (1.0 / math.sqrt(I))
    b = jax.random.normal(k4, (H,), dtype=jnp.float32) * 0.01
    gamma = jnp.ones((H,), dtype=jnp.float32)
    beta = jnp.zeros((H,), dtype=jnp.float32)

    ref = _reference(hidden_states, input_tensor, w, b, gamma, beta, eps=eps)

    # Default path: weight-resident single K step, 1-D row grid.
    out = sparse_bert_output(hidden_states, input_tensor, w, b, gamma, beta, eps=eps)
    out = jax.block_until_ready(out)
    assert out.shape == (B, S, H)
    err = float(jnp.max(jnp.abs(out - ref)))
    assert jnp.allclose(out, ref, atol=2e-3, rtol=2e-3), \
        f"single-K mismatch vs reference (max abs err {err})"

    # K-tiled path: exercises the f32 accumulator kernel (block_k divides I).
    out_k = sparse_bert_output(hidden_states, input_tensor, w, b, gamma, beta,
                               eps=eps, block_k=128)
    out_k = jax.block_until_ready(out_k)
    err_k = float(jnp.max(jnp.abs(out_k - ref)))
    assert jnp.allclose(out_k, ref, atol=2e-3, rtol=2e-3), \
        f"multi-K mismatch vs reference (max abs err {err_k})"

    # TODO(synk): hidden_mask path (data-dependent index_select LayerNorm) and
    # the hidden_states-is-None branch are not implemented; dense eval path
    # only (dropout is identity in eval mode).
    print("KERNEL_OK")
</pallas_src>

<mosaic_0001>
module attributes {stable_mosaic.version = 11 : i64} {
  func.func @_fused_kernel_single_k(%arg0: i32, %arg1: memref<8x512xf32, #tpu.memory_space<vmem>>, %arg2: memref<8x128xf32, #tpu.memory_space<vmem>>, %arg3: memref<512x128xbf16, #tpu.memory_space<vmem>>, %arg4: memref<1x128xf32, #tpu.memory_space<vmem>>, %arg5: memref<1x128xf32, #tpu.memory_space<vmem>>, %arg6: memref<1x128xf32, #tpu.memory_space<vmem>>, %arg7: memref<8x128xf32, #tpu.memory_space<vmem>>) attributes {dimension_semantics = [#tpu.dimension_semantics<parallel>], iteration_bounds = array<i64: 2>, scalar_prefetch = 0 : i64, scratch_operands = 0 : i64, tpu.core_type = #tpu.core_type<tc>, window_params = [{transform_indices = @transform_0, window_bounds = array<i64: 8, 512>}, {transform_indices = @transform_1, window_bounds = array<i64: 8, 128>}, {pipeline_mode = #tpu.pipeline_mode<synchronous>, transform_indices = @transform_2, window_bounds = array<i64: 512, 128>}, {pipeline_mode = #tpu.pipeline_mode<synchronous>, transform_indices = @transform_3, window_bounds = array<i64: 1, 128>}, {pipeline_mode = #tpu.pipeline_mode<synchronous>, transform_indices = @transform_4, window_bounds = array<i64: 1, 128>}, {pipeline_mode = #tpu.pipeline_mode<synchronous>, transform_indices = @transform_5, window_bounds = array<i64: 1, 128>}, {transform_indices = @transform_6, window_bounds = array<i64: 8, 128>}]} {
    %c0 = arith.constant 0 : index
    %c0_0 = arith.constant 0 : index
    %0 = vector.load %arg1[%c0, %c0_0] : memref<8x512xf32, #tpu.memory_space<vmem>>, vector<8x512xf32>
    %1 = arith.truncf %0 : vector<8x512xf32> to vector<8x512xbf16>
    %c0_1 = arith.constant 0 : index
    %c0_2 = arith.constant 0 : index
    %2 = vector.load %arg3[%c0_1, %c0_2] : memref<512x128xbf16, #tpu.memory_space<vmem>>, vector<512x128xbf16>
    %cst = arith.constant dense<0.000000e+00> : vector<8x128xf32>
    %3 = tpu.matmul %1, %2, %cst {dimension_numbers = #tpu.dot_dimension_numbers<[1], [0], [0], [1], [0, 0, 1, 1], [], []>} : vector<8x512xbf16>, vector<512x128xbf16>, vector<8x128xf32> -> vector<8x128xf32>
    %c0_3 = arith.constant 0 : index
    %c0_4 = arith.constant 0 : index
    %4 = vector.load %arg4[%c0_3, %c0_4] : memref<1x128xf32, #tpu.memory_space<vmem>>, vector<1x128xf32>
    %5 = vector.broadcast %4 : vector<1x128xf32> to vector<8x128xf32>
    %6 = arith.addf %3, %5 : vector<8x128xf32>
    %c0_5 = arith.constant 0 : index
    %c0_6 = arith.constant 0 : index
    %7 = vector.load %arg2[%c0_5, %c0_6] : memref<8x128xf32, #tpu.memory_space<vmem>>, vector<8x128xf32>
    %8 = arith.addf %6, %7 : vector<8x128xf32>
    %c0_7 = arith.constant 0 : index
    %c0_8 = arith.constant 0 : index
    %9 = vector.load %arg5[%c0_7, %c0_8] : memref<1x128xf32, #tpu.memory_space<vmem>>, vector<1x128xf32>
    %c0_9 = arith.constant 0 : index
    %c0_10 = arith.constant 0 : index
    %10 = vector.load %arg6[%c0_9, %c0_10] : memref<1x128xf32, #tpu.memory_space<vmem>>, vector<1x128xf32>
    %cst_11 = arith.constant dense<0.000000e+00> : vector<8xf32>
    %11 = vector.multi_reduction <add>, %8, %cst_11 [1] : vector<8x128xf32> to vector<8xf32>
    %12 = vector.shape_cast %11 : vector<8xf32> to vector<8x1xf32>
    %cst_12 = arith.constant 7.812500e-03 : f32
    %13 = vector.broadcast %cst_12 : f32 to vector<8x1xf32>
    %14 = arith.mulf %12, %13 : vector<8x1xf32>
    %15 = arith.mulf %8, %8 : vector<8x128xf32>
    %cst_13 = arith.constant dense<0.000000e+00> : vector<8xf32>
    %16 = vector.multi_reduction <add>, %15, %cst_13 [1] : vector<8x128xf32> to vector<8xf32>
    %17 = vector.shape_cast %16 : vector<8xf32> to vector<8x1xf32>
    %cst_14 = arith.constant 7.812500e-03 : f32
    %18 = vector.broadcast %cst_14 : f32 to vector<8x1xf32>
    %19 = arith.mulf %17, %18 : vector<8x1xf32>
    %20 = arith.mulf %14, %14 : vector<8x1xf32>
    %21 = arith.subf %19, %20 : vector<8x1xf32>
    %cst_15 = arith.constant 0.000000e+00 : f32
    %22 = vector.broadcast %cst_15 : f32 to vector<8x1xf32>
    %23 = arith.maximumf %21, %22 : vector<8x1xf32>
    %24 = vector.broadcast %14 : vector<8x1xf32> to vector<8x128xf32>
    %25 = arith.subf %8, %24 : vector<8x128xf32>
    %cst_16 = arith.constant 9.99999996E-13 : f32
    %26 = vector.broadcast %cst_16 : f32 to vector<8x1xf32>
    %27 = arith.addf %23, %26 : vector<8x1xf32>
    %28 = math.rsqrt %27 : vector<8x1xf32>
    %29 = vector.broadcast %28 : vector<8x1xf32> to vector<8x128xf32>
    %30 = arith.mulf %25, %29 : vector<8x128xf32>
    %31 = vector.broadcast %9 : vector<1x128xf32> to vector<8x128xf32>
    %32 = arith.mulf %30, %31 : vector<8x128xf32>
    %33 = vector.broadcast %10 : vector<1x128xf32> to vector<8x128xf32>
    %34 = arith.addf %32, %33 : vector<8x128xf32>
    %c0_17 = arith.constant 0 : index
    %c0_18 = arith.constant 0 : index
    %35 = vector.load %arg7[%c0_17, %c0_18] : memref<8x128xf32, #tpu.memory_space<vmem>>, vector<8x128xf32>
    tpu.vector_store %arg7[%c0_17, %c0_18], %34 {strides = array<i32>} : memref<8x128xf32, #tpu.memory_space<vmem>>, vector<8x128xf32>,
    return
  }
  func.func @transform_0(%arg0: i32) -> (i32, i32) {
    %c0_i32 = arith.constant 0 : i32
    %c0_i32_0 = arith.constant 0 : i32
    return %arg0, %c0_i32 : i32, i32
  }
  func.func @transform_1(%arg0: i32) -> (i32, i32) {
    %c0_i32 = arith.constant 0 : i32
    %c0_i32_0 = arith.constant 0 : i32
    return %arg0, %c0_i32 : i32, i32
  }
  func.func @transform_2(%arg0: i32) -> (i32, i32) {
    %c0_i32 = arith.constant 0 : i32
    %c0_i32_0 = arith.constant 0 : i32
    %c0_i32_1 = arith.constant 0 : i32
    return %c0_i32, %c0_i32_0 : i32, i32
  }
  func.func @transform_3(%arg0: i32) -> (i32, i32) {
    %c0_i32 = arith.constant 0 : i32
    %c0_i32_0 = arith.constant 0 : i32
    %c0_i32_1 = arith.constant 0 : i32
    return %c0_i32, %c0_i32_0 : i32, i32
  }
  func.func @transform_4(%arg0: i32) -> (i32, i32) {
    %c0_i32 = arith.constant 0 : i32
    %c0_i32_0 = arith.constant 0 : i32
    %c0_i32_1 = arith.constant 0 : i32
    return %c0_i32, %c0_i32_0 : i32, i32
  }
  func.func @transform_5(%arg0: i32) -> (i32, i32) {
    %c0_i32 = arith.constant 0 : i32
    %c0_i32_0 = arith.constant 0 : i32
    %c0_i32_1 = arith.constant 0 : i32
    return %c0_i32, %c0_i32_0 : i32, i32
  }
  func.func @transform_6(%arg0: i32) -> (i32, i32) {
    %c0_i32 = arith.constant 0 : i32
    %c0_i32_0 = arith.constant 0 : i32
    return %arg0, %c0_i32 : i32, i32
  }
}

module attributes {stable_mosaic.version = 11 : i64} {
  func.func @_fused_kernel_single_k(%arg0: i32, %arg1: memref<8x512xf32, #tpu.memory_space<vmem>>, %arg2: memref<8x128xf32, #tpu.memory_space<vmem>>, %arg3: memref<512x128xbf16, #tpu.memory_space<vmem>>, %arg4: memref<1x128xf32, #tpu.memory_space<vmem>>, %arg5: memref<1x128xf32, #tpu.memory_space<vmem>>, %arg6: memref<1x128xf32, #tpu.memory_space<vmem>>, %arg7: memref<8x128xf32, #tpu.memory_space<vmem>>) attributes {dimension_semantics = [#tpu.dimension_semantics<parallel>], iteration_bounds = array<i64: 2>, scalar_prefetch = 0 : i64, scratch_operands = 0 : i64, tpu.core_type = #tpu.core_type<tc>, window_params = [{transform_indices = @transform_0, window_bounds = array<i64: 8, 512>}, {transform_indices = @transform_1, window_bounds = array<i64: 8, 128>}, {pipeline_mode = #tpu.pipeline_mode<synchronous>, transform_indices = @transform_2, window_bounds = array<i64: 512, 128>}, {pipeline_mode = #tpu.pipeline_mode<synchronous>, transform_indices = @transform_3, window_bounds = array<i64: 1, 128>}, {pipeline_mode = #tpu.pipeline_mode<synchronous>, transform_indices = @transform_4, window_bounds = array<i64: 1, 128>}, {pipeline_mode = #tpu.pipeline_mode<synchronous>, transform_indices = @transform_5, window_bounds = array<i64: 1, 128>}, {transform_indices = @transform_6, window_bounds = array<i64: 8, 128>}]} {
    %c0 = arith.constant 0 : index
    %c0_0 = arith.constant 0 : index
    %0 = vector.load %arg1[%c0, %c0_0] : memref<8x512xf32, #tpu.memory_space<vmem>>, vector<8x512xf32>
    %1 = arith.truncf %0 : vector<8x512xf32> to vector<8x512xbf16>
    %c0_1 = arith.constant 0 : index
    %c0_2 = arith.constant 0 : index
    %2 = vector.load %arg3[%c0_1, %c0_2] : memref<512x128xbf16, #tpu.memory_space<vmem>>, vector<512x128xbf16>
    %cst = arith.constant dense<0.000000e+00> : vector<8x128xf32>
    %3 = tpu.matmul %1, %2, %cst {dimension_numbers = #tpu.dot_dimension_numbers<[1], [0], [0], [1], [0, 0, 1, 1], [], []>} : vector<8x512xbf16>, vector<512x128xbf16>, vector<8x128xf32> -> vector<8x128xf32>
    %c0_3 = arith.constant 0 : index
    %c0_4 = arith.constant 0 : index
    %4 = vector.load %arg4[%c0_3, %c0_4] : memref<1x128xf32, #tpu.memory_space<vmem>>, vector<1x128xf32>
    %5 = vector.broadcast %4 : vector<1x128xf32> to vector<8x128xf32>
    %6 = arith.addf %3, %5 : vector<8x128xf32>
    %c0_5 = arith.constant 0 : index
    %c0_6 = arith.constant 0 : index
    %7 = vector.load %arg2[%c0_5, %c0_6] : memref<8x128xf32, #tpu.memory_space<vmem>>, vector<8x128xf32>
    %8 = arith.addf %6, %7 : vector<8x128xf32>
    %c0_7 = arith.constant 0 : index
    %c0_8 = arith.constant 0 : index
    %9 = vector.load %arg5[%c0_7, %c0_8] : memref<1x128xf32, #tpu.memory_space<vmem>>, vector<1x128xf32>
    %c0_9 = arith.constant 0 : index
    %c0_10 = arith.constant 0 : index
    %10 = vector.load %arg6[%c0_9, %c0_10] : memref<1x128xf32, #tpu.memory_space<vmem>>, vector<1x128xf32>
    %cst_11 = arith.constant dense<0.000000e+00> : vector<8xf32>
    %11 = vector.multi_reduction <add>, %8, %cst_11 [1] : vector<8x128xf32> to vector<8xf32>
    %12 = vector.shape_cast %11 : vector<8xf32> to vector<8x1xf32>
    %cst_12 = arith.constant 7.812500e-03 : f32
    %13 = vector.broadcast %cst_12 : f32 to vector<8x1xf32>
    %14 = arith.mulf %12, %13 : vector<8x1xf32>
    %15 = arith.mulf %8, %8 : vector<8x128xf32>
    %cst_13 = arith.constant dense<0.000000e+00> : vector<8xf32>
    %16 = vector.multi_reduction <add>, %15, %cst_13 [1] : vector<8x128xf32> to vector<8xf32>
    %17 = vector.shape_cast %16 : vector<8xf32> to vector<8x1xf32>
    %cst_14 = arith.constant 7.812500e-03 : f32
    %18 = vector.broadcast %cst_14 : f32 to vector<8x1xf32>
    %19 = arith.mulf %17, %18 : vector<8x1xf32>
    %20 = arith.mulf %14, %14 : vector<8x1xf32>
    %21 = arith.subf %19, %20 : vector<8x1xf32>
    %cst_15 = arith.constant 0.000000e+00 : f32
    %22 = vector.broadcast %cst_15 : f32 to vector<8x1xf32>
    %23 = arith.maximumf %21, %22 : vector<8x1xf32>
    %24 = vector.broadcast %14 : vector<8x1xf32> to vector<8x128xf32>
    %25 = arith.subf %8, %24 : vector<8x128xf32>
    %cst_16 = arith.constant 9.99999996E-13 : f32
    %26 = vector.broadcast %cst_16 : f32 to vector<8x1xf32>
    %27 = arith.addf %23, %26 : vector<8x1xf32>
    %28 = math.rsqrt %27 : vector<8x1xf32>
    %29 = vector.broadcast %28 : vector<8x1xf32> to vector<8x128xf32>
    %30 = arith.mulf %25, %29 : vector<8x128xf32>
    %31 = vector.broadcast %9 : vector<1x128xf32> to vector<8x128xf32>
    %32 = arith.mulf %30, %31 : vector<8x128xf32>
    %33 = vector.broadcast %10 : vector<1x128xf32> to vector<8x128xf32>
    %34 = arith.addf %32, %33 : vector<8x128xf32>
    %c0_17 = arith.constant 0 : index
    %c0_18 = arith.constant 0 : index
    %35 = vector.load %arg7[%c0_17, %c0_18] : memref<8x128xf32, #tpu.memory_space<vmem>>, vector<8x128xf32>
    tpu.vector_store %arg7[%c0_17, %c0_18], %34 {strides = array<i32>} : memref<8x128xf32, #tpu.memory_space<vmem>>, vector<8x128xf32>,
    return
  }
  func.func @transform_0(%arg0: i32) -> (i32, i32) {
    %c0_i32 = arith.constant 0 : i32
    %c0_i32_0 = arith.constant 0 : i32
    return %arg0, %c0_i32 : i32, i32
  }
  func.func @transform_1(%arg0: i32) -> (i32, i32) {
    %c0_i32 = arith.constant 0 : i32
    %c0_i32_0 = arith.constant 0 : i32
    return %arg0, %c0_i32 : i32, i32
  }
  func.func @transform_2(%arg0: i32) -> (i32, i32) {
    %c0_i32 = arith.constant 0 : i32
    %c0_i32_0 = arith.constant 0 : i32
    %c0_i32_1 = arith.constant 0 : i32
    return %c0_i32, %c0_i32_0 : i32, i32
  }
  func.func @transform_3(%arg0: i32) -> (i32, i32) {
    %c0_i32 = arith.constant 0 : i32
    %c0_i32_0 = arith.constant 0 : i32
    %c0_i32_1 = arith.constant 0 : i32
    return %c0_i32, %c0_i32_0 : i32, i32
  }
  func.func @transform_4(%arg0: i32) -> (i32, i32) {
    %c0_i32 = arith.constant 0 : i32
    %c0_i32_0 = arith.constant 0 : i32
    %c0_i32_1 = arith.constant 0 : i32
    return %c0_i32, %c0_i32_0 : i32, i32
  }
  func.func @transform_5(%arg0: i32) -> (i32, i32) {
    %c0_i32 = arith.constant 0 : i32
    %c0_i32_0 = arith.constant 0 : i32
    %c0_i32_1 = arith.constant 0 : i32
    return %c0_i32, %c0_i32_0 : i32, i32
  }
  func.func @transform_6(%arg0: i32) -> (i32, i32) {
    %c0_i32 = arith.constant 0 : i32
    %c0_i32_0 = arith.constant 0 : i32
    return %arg0, %c0_i32 : i32, i32
  }
}

</mosaic_0001>

<llo_original>
// kernel: tpu_custom_call.1
$region0: #{tpu_custom_call.1}
  #allocation0 [shape = 'u32[]', space=smem, size = 0x4, offset = 0x4, fixed_abs, tag = 'smem constant byte address 0x4 - core index']
  #allocation1 [shape = 'u32[144,128]{1,0:T(1,128)}', space=vmem, size = 0x12000, scoped, tag = 'internal scratch']
  %s0 = inlined_call_operand.hbm [shape: f32[16,512], index: 0, kind: input, shape index: {}]
  %s1 = inlined_call_operand.hbm [shape: f32[16,128], index: 1, kind: input, shape index: {}]
  %s2 = inlined_call_operand.hbm [shape: bf16[512,128], index: 2, kind: input, shape index: {}]
  %s3 = inlined_call_operand.vmem [shape: f32[1,128], index: 3, kind: input, shape index: {}]
  %s4 = inlined_call_operand.vmem [shape: f32[1,128], index: 4, kind: input, shape index: {}]
  %s5 = inlined_call_operand.vmem [shape: f32[1,128], index: 5, kind: input, shape index: {}]
  %s6 = inlined_call_operand.hbm [shape: f32[16,128], index: 6, kind: output, shape index: {}]
  %s7 = sld [smem:[#allocation0]]
  $region69: #{tpu_custom_call.1} parent=0
    _
  %s9 = ssub.s32 1, %s7
  %s10 = scalar_select 0, %s9, %s7
  $region1: #{tpu_custom_call.1} parent=0
    #allocation2 [shape = 'u8[32768]{0}', space=vmem, size = 0x8000, scoped, tag = 'input window, operand 0']
    #allocation3 [shape = 's32[2]{0}', space=sflag, size = 0x8, scoped, tag = 'scoped memory for tpu_custom_call.1']
    #allocation4 [shape = 's32[2]{0}', space=sflag, size = 0x8, scoped, tag = 'scoped memory for tpu_custom_call.1']
    #allocation5 [shape = 'u8[8192]{0}', space=vmem, size = 0x2000, scoped, tag = 'input window, operand 1']
    #allocation6 [shape = 's32[2]{0}', space=sflag, size = 0x8, scoped, tag = 'scoped memory for tpu_custom_call.1']
    #allocation7 [shape = 'u8[131072]{0}', space=vmem, size = 0x20000, scoped, tag = 'input window, operand 2, single buffered']
    #allocation8 [shape = 'u8[8192]{0}', space=vmem, size = 0x2000, scoped, tag = 'output window, operand 0']
    %11 = vsyncpa [#allocation3], 0
    %s12 = scalar_lea.sflag [#allocation3], 1
    %13 = vsyncpa %s12, 0
    %14 = vsyncpa [#allocation6], 0
    %s15 = scalar_lea.sflag [#allocation6], 1
    %16 = vsyncpa %s15, 0
    %17 = vsyncpa [#allocation4], 0
    %s18 = scalar_lea.sflag [#allocation4], 1
    %19 = vsyncpa %s18, 0
    loop: start=0, step=1, limit=4
    $region2: #{tpu_custom_call.1} parent=1 // loop_pre_header
      _
    $region3: #{tpu_custom_call.1} parent=1 // loop_header
      %s21 = sphi 0, %s25
      %p22 = scmp.ge.s32.totalorder %s21, 4
      %s31 = sphi 0, %s33
      %s34 = sphi 0, %s31
      %s35 = sphi 0, %s34
      %s51 = sphi 0, %s35
      %s57 = sphi 0, %s59
      %s60 = sphi 0, %s57
      %s61 = sphi 0, %s60
      %s77 = sphi 0, %s61
      %s81 = sphi 0, %s81
      %s83 = sphi 0, %s81
      %s84 = sphi 0, %s83
      %s98 = sphi 0, %s84
      %s102 = sphi 0, %s102
      %s104 = sphi 0, %s102
      %s105 = sphi 0, %s104
      %s119 = sphi 0, %s105
      %s123 = sphi 0, %s123
      %s125 = sphi 0, %s123
      %s126 = sphi 0, %s125
      %s140 = sphi 0, %s126
      %s144 = sphi 0, %s144
      %s146 = sphi 0, %s144
      %s147 = sphi 0, %s146
      %s161 = sphi 0, %s147
      %s167 = sphi 0, %s169
      %s170 = sphi 0, %s167
      %s171 = sphi 0, %s170
      %s187 = sphi 0, %s171
    $region4: #{tpu_custom_call.1} parent=1 // loop_header_branch
      %24 = sbr.rel (%p22) target = $region8
    $region5: #{tpu_custom_call.1} parent=1 // loop_body
      %s26 = ssub.s32 %s21, 1
      %s27 = ssub.s32 %s21, 2
      %s28 = sadd.s32 %s21, 1
      %s29 = ssub.s32 %s21, %s28
      %p30 = scmp.eq.s32.totalorder %s29, 0
      %s32 = sadd.s32 %s31, 1
      %s33 = scalar_select %p30, %s31, %s32
      %p36 = pneg %p30
      %p37 = scmp.eq.s32.totalorder %s21, 1
      %p38 = por %p36, %p37
      %p39 = scmp.ne.s32.totalorder %s31, %s34
      %p40 = scmp.eq.s32.totalorder %s21, 0
      %p41 = por %p39, %p40
      %p42 = scmp.ne.s32.totalorder %s31, %s34
      %p43 = scmp.eq.s32.totalorder %s26, 1
      %p44 = por %p42, %p43
      %p45 = scmp.ne.s32.totalorder %s34, %s35
      %p46 = scmp.eq.s32.totalorder %s26, 0
      %p47 = por %p45, %p46
      %p48 = scmp.ne.s32.totalorder %s34, %s35
      %p49 = scmp.eq.s32.totalorder %s27, 1
      %p50 = por %p48, %p49
      %p52 = scmp.ne.s32.totalorder %s35, %s51
      %p53 = scmp.eq.s32.totalorder %s27, 0
      %p54 = por %p52, %p53
      %s55 = ssub.s32 %s21, %s28
      %p56 = scmp.eq.s32.totalorder %s55, 0
      %s58 = sadd.s32 %s57, 1
      %s59 = scalar_select %p56, %s57, %s58
      %p62 = pneg %p56
      %p63 = scmp.eq.s32.totalorder %s21, 1
      %p64 = por %p62, %p63
      %p65 = scmp.ne.s32.totalorder %s57, %s60
      %p66 = scmp.eq.s32.totalorder %s21, 0
      %p67 = por %p65, %p66
      %p68 = scmp.ne.s32.totalorder %s57, %s60
      %p69 = scmp.eq.s32.totalorder %s26, 1
      %p70 = por %p68, %p69
      %p71 = scmp.ne.s32.totalorder %s60, %s61
      %p72 = scmp.eq.s32.totalorder %s26, 0
      %p73 = por %p71, %p72
      %p74 = scmp.ne.s32.totalorder %s60, %s61
      %p75 = scmp.eq.s32.totalorder %s27, 1
      %p76 = por %p74, %p75
      %p78 = scmp.ne.s32.totalorder %s61, %s77
      %p79 = scmp.eq.s32.totalorder %s27, 0
      %p80 = por %p78, %p79
      %s82 = sadd.s32 %s81, 1
      %p85 = scmp.eq.s32.totalorder %s21, 1
      %p86 = scmp.ne.s32.totalorder %s81, %s83
      %p87 = scmp.eq.s32.totalorder %s21, 0
      %p88 = por %p86, %p87
      %p89 = scmp.ne.s32.totalorder %s81, %s83
      %p90 = scmp.eq.s32.totalorder %s26, 1
      %p91 = por %p89, %p90
      %p92 = scmp.ne.s32.totalorder %s83, %s84
      %p93 = scmp.eq.s32.totalorder %s26, 0
      %p94 = por %p92, %p93
      %p95 = scmp.ne.s32.totalorder %s83, %s84
      %p96 = scmp.eq.s32.totalorder %s27, 1
      %p97 = por %p95, %p96
      %p99 = scmp.ne.s32.totalorder %s84, %s98
      %p100 = scmp.eq.s32.totalorder %s27, 0
      %p101 = por %p99, %p100
      %s103 = sadd.s32 %s102, 1
      %p106 = scmp.eq.s32.totalorder %s21, 1
      %p107 = scmp.ne.s32.totalorder %s102, %s104
      %p108 = scmp.eq.s32.totalorder %s21, 0
      %p109 = por %p107, %p108
      %p110 = scmp.ne.s32.totalorder %s102, %s104
      %p111 = scmp.eq.s32.totalorder %s26, 1
      %p112 = por %p110, %p111
      %p113 = scmp.ne.s32.totalorder %s104, %s105
      %p114 = scmp.eq.s32.totalorder %s26, 0
      %p115 = por %p113, %p114
      %p116 = scmp.ne.s32.totalorder %s104, %s105
      %p117 = scmp.eq.s32.totalorder %s27, 1
      %p118 = por %p116, %p117
      %p120 = scmp.ne.s32.totalorder %s105, %s119
      %p121 = scmp.eq.s32.totalorder %s27, 0
      %p122 = por %p120, %p121
      %s124 = sadd.s32 %s123, 1
      %p127 = scmp.eq.s32.totalorder %s21, 1
      %p128 = scmp.ne.s32.totalorder %s123, %s125
      %p129 = scmp.eq.s32.totalorder %s21, 0
      %p130 = por %p128, %p129
      %p131 = scmp.ne.s32.totalorder %s123, %s125
      %p132 = scmp.eq.s32.totalorder %s26, 1
      %p133 = por %p131, %p132
      %p134 = scmp.ne.s32.totalorder %s125, %s126
      %p135 = scmp.eq.s32.totalorder %s26, 0
      %p136 = por %p134, %p135
      %p137 = scmp.ne.s32.totalorder %s125, %s126
      %p138 = scmp.eq.s32.totalorder %s27, 1
      %p139 = por %p137, %p138
      %p141 = scmp.ne.s32.totalorder %s126, %s140
      %p142 = scmp.eq.s32.totalorder %s27, 0
      %p143 = por %p141, %p142
      %s145 = sadd.s32 %s144, 1
      %p148 = scmp.eq.s32.totalorder %s21, 1
      %p149 = scmp.ne.s32.totalorder %s144, %s146
      %p150 = scmp.eq.s32.totalorder %s21, 0
      %p151 = por %p149, %p150
      %p152 = scmp.ne.s32.totalorder %s144, %s146
      %p153 = scmp.eq.s32.totalorder %s26, 1
      %p154 = por %p152, %p153
      %p155 = scmp.ne.s32.totalorder %s146, %s147
      %p156 = scmp.eq.s32.totalorder %s26, 0
      %p157 = por %p155, %p156
      %p158 = scmp.ne.s32.totalorder %s146, %s147
      %p159 = scmp.eq.s32.totalorder %s27, 1
      %p160 = por %p158, %p159
      %p162 = scmp.ne.s32.totalorder %s147, %s161
      %p163 = scmp.eq.s32.totalorder %s27, 0
      %p164 = por %p162, %p163
      %s165 = ssub.s32 %s21, %s28
      %p166 = scmp.eq.s32.totalorder %s165, 0
      %s168 = sadd.s32 %s167, 1
      %s169 = scalar_select %p166, %s167, %s168
      %p172 = pneg %p166
      %p173 = scmp.eq.s32.totalorder %s21, 1
      %p174 = por %p172, %p173
      %p175 = scmp.ne.s32.totalorder %s167, %s170
      %p176 = scmp.eq.s32.totalorder %s21, 0
      %p177 = por %p175, %p176
      %p178 = scmp.ne.s32.totalorder %s167, %s170
      %p179 = scmp.eq.s32.totalorder %s26, 1
      %p180 = por %p178, %p179
      %p181 = scmp.ne.s32.totalorder %s170, %s171
      %p182 = scmp.eq.s32.totalorder %s26, 0
      %p183 = por %p181, %p182
      %p184 = scmp.ne.s32.totalorder %s170, %s171
      %p185 = scmp.eq.s32.totalorder %s27, 1
      %p186 = por %p184, %p185
      %p188 = scmp.ne.s32.totalorder %s171, %s187
      %p189 = scmp.eq.s32.totalorder %s27, 0
      %p190 = por %p188, %p189
      %p191 = scmp.le.s32.totalorder 1, %s21
      %p192 = scmp.lt.s32.totalorder %s21, 3
      %p193 = pnand %p191, %p192
      %p194 = pneg %p193
      // Predicated region
      $region9: #{tpu_custom_call.1} parent=5 // pred_check
        _
      $region10: #{tpu_custom_call.1} parent=5 // pred_check_branch
        %196 = sbr.rel (%p193) target = $region12
      $region11: #{tpu_custom_call.1} parent=5 // pred_region
        %s197 = ssub.s32 %s21, 1
        // Predicated region
        $region13: #{tpu_custom_call.1} parent=11 // pred_check
          %p198 = pneg %p94
        $region14: #{tpu_custom_call.1} parent=11 // pred_check_branch
          %200 = sbr.rel (%p198) target = $region16
        $region15: #{tpu_custom_call.1} parent=11 // pred_region
          %s202 = ssub.s32 4096, 4096
          %203 = vsyncadd [#allocation6], %s202
          %s204 = sshll.u32 [#allocation7], 4
          %s205 = int_to_ptr.vmem [resolvable:$true] %s204
          %210 = dma.hbm_to_vmem [thread:$0]  %s2, 4096, %s205, [#allocation6], 64, 64, 4
        $region16: #{tpu_custom_call.1} parent=11 // pred_fallthru
          _
        // Predicated region
        $region17: #{tpu_custom_call.1} parent=11 // pred_check
          %p211 = pneg %p115
        $region18: #{tpu_custom_call.1} parent=11 // pred_check_branch
          %213 = sbr.rel (%p211) target = $region20
        $region19: #{tpu_custom_call.1} parent=11 // pred_region
          _
        $region20: #{tpu_custom_call.1} parent=11 // pred_fallthru
          _
        // Predicated region
        $region21: #{tpu_custom_call.1} parent=11 // pred_check
          %p214 = pneg %p136
        $region22: #{tpu_custom_call.1} parent=11 // pred_check_branch
          %216 = sbr.rel (%p214) target = $region24
        $region23: #{tpu_custom_call.1} parent=11 // pred_region
          _
        $region24: #{tpu_custom_call.1} parent=11 // pred_fallthru
          _
        // Predicated region
        $region25: #{tpu_custom_call.1} parent=11 // pred_check
          %p217 = pneg %p157
        $region26: #{tpu_custom_call.1} parent=11 // pred_check_branch
          %219 = sbr.rel (%p217) target = $region28
        $region27: #{tpu_custom_call.1} parent=11 // pred_region
          _
        $region28: #{tpu_custom_call.1} parent=11 // pred_fallthru
          _
      $region12: #{tpu_custom_call.1} parent=5 // pred_fallthru
        _
      %p220 = scmp.lt.s32.totalorder %s21, 2
      // Predicated region
      $region29: #{tpu_custom_call.1} parent=5 // pred_check
        %p221 = pneg %p220
      $region30: #{tpu_custom_call.1} parent=5 // pred_check_branch
        %223 = sbr.rel (%p221) target = $region32
      $region31: #{tpu_custom_call.1} parent=5 // pred_region
        // Predicated region
        $region33: #{tpu_custom_call.1} parent=31 // pred_check
          %p224 = pneg %p41
        $region34: #{tpu_custom_call.1} parent=31 // pred_check_branch
          %226 = sbr.rel (%p224) target = $region36
        $region35: #{tpu_custom_call.1} parent=31 // pred_region
          %s227 = sand.u32 %s31, 1
          %s228 = scalar_lea.sflag [#allocation3], %s227
          %s229 = sand.u32 %s31, 1
          %s230 = smul.addr %s229, 32
          %s231 = scalar_lea.vmem [#allocation2], %s230
          %s233 = ssub.s32 512, 512
          %234 = vsyncadd %s228, %s233
          %s235 = smul.addr %s21, 4
          %s236 = smul.addr %s235, 128
          %s237 = scalar_lea.hbm %s0, %s236
          %s239 = sshll.u32 %s231, 4
          %s240 = int_to_ptr.vmem [resolvable:$true] %s239
          %242 = dma.hbm_to_vmem [thread:$0]  %s237, 512, %s240, %s228
        $region36: #{tpu_custom_call.1} parent=31 // pred_fallthru
          _
        // Predicated region
        $region37: #{tpu_custom_call.1} parent=31 // pred_check
          %p243 = pneg %p67
        $region38: #{tpu_custom_call.1} parent=31 // pred_check_branch
          %245 = sbr.rel (%p243) target = $region40
        $region39: #{tpu_custom_call.1} parent=31 // pred_region
          %s246 = sand.u32 %s21, 1
          %s247 = scalar_lea.sflag [#allocation6], %s246
          %s248 = sand.u32 %s57, 1
          %s249 = smul.addr %s248, 8
          %s250 = scalar_lea.vmem [#allocation5], %s249
          %s252 = ssub.s32 128, 128
          %253 = vsyncadd %s247, %s252
          %s254 = smul.addr %s21, 128
          %s255 = scalar_lea.hbm %s1, %s254
          %s257 = sshll.u32 %s250, 4
          %s258 = int_to_ptr.vmem [resolvable:$true] %s257
          %260 = dma.hbm_to_vmem [thread:$0]  %s255, 128, %s258, %s247
        $region40: #{tpu_custom_call.1} parent=31 // pred_fallthru
          _
      $region32: #{tpu_custom_call.1} parent=5 // pred_fallthru
        _
      %p261 = scmp.le.s32.totalorder 1, %s21
      %p262 = scmp.lt.s32.totalorder %s21, 3
      %p263 = pnand %p261, %p262
      %p264 = pneg %p263
      // Predicated region
      $region41: #{tpu_custom_call.1} parent=5 // pred_check
        _
      $region42: #{tpu_custom_call.1} parent=5 // pred_check_branch
        %266 = sbr.rel (%p263) target = $region44
      $region43: #{tpu_custom_call.1} parent=5 // pred_region
        %s267 = ssub.s32 %s21, 1
        %s268 = sand.u32 %s34, 1
        %s269 = scalar_lea.sflag [#allocation3], %s268
        %s270 = sand.u32 %s34, 1
        %s271 = smul.addr %s270, 32
        %s272 = scalar_lea.vmem [#allocation2], %s271
        // Predicated region
        $region45: #{tpu_custom_call.1} parent=43 // pred_check
          %p273 = pneg %p47
        $region46: #{tpu_custom_call.1} parent=43 // pred_check_branch
          %275 = sbr.rel (%p273) target = $region48
        $region47: #{tpu_custom_call.1} parent=43 // pred_region
          %276 = dma.done %s269, 512
        $region48: #{tpu_custom_call.1} parent=43 // pred_fallthru
          _
        %s277 = sand.u32 %s26, 1
        %s278 = scalar_lea.sflag [#allocation6], %s277
        %s279 = sand.u32 %s60, 1
        %s280 = smul.addr %s279, 8
        %s281 = scalar_lea.vmem [#allocation5], %s280
        // Predicated region
        $region49: #{tpu_custom_call.1} parent=43 // pred_check
          %p282 = pneg %p73
        $region50: #{tpu_custom_call.1} parent=43 // pred_check_branch
          %284 = sbr.rel (%p282) target = $region52
        $region51: #{tpu_custom_call.1} parent=43 // pred_region
          %285 = dma.done %s278, 128
        $region52: #{tpu_custom_call.1} parent=43 // pred_fallthru
          _
        // Predicated region
        $region53: #{tpu_custom_call.1} parent=43 // pred_check
          %p286 = pneg %p94
        $region54: #{tpu_custom_call.1} parent=43 // pred_check_branch
          %288 = sbr.rel (%p286) target = $region56
        $region55: #{tpu_custom_call.1} parent=43 // pred_region
          %289 = dma.done [#allocation6], 4096
        $region56: #{tpu_custom_call.1} parent=43 // pred_fallthru
          _
        %s290 = sand.u32 %s34, 1
        %s291 = scalar_lea.sflag [#allocation3], %s290
        %s292 = sand.u32 %s34, 1
        %s293 = smul.addr %s292, 32
        %s294 = scalar_lea.vmem [#allocation2], %s293
        %p295 = pneg %p47
        %p296 = pneg %p44
        %s297 = sand.u32 %s26, 1
        %s298 = scalar_lea.sflag [#allocation6], %s297
        %s299 = sand.u32 %s60, 1
        %s300 = smul.addr %s299, 8
        %s301 = scalar_lea.vmem [#allocation5], %s300
        %p302 = pneg %p73
        %p303 = pneg %p70
        %p304 = pneg %p94
        %p305 = pneg %p91
        %p306 = pneg %p115
        %p307 = pneg %p112
        %p308 = pneg %p136
        %p309 = pneg %p133
        %p310 = pneg %p157
        %p311 = pneg %p154
        %p312 = pneg %p183
        %p313 = pneg %p180
        %s314 = sand.u32 %s170, 1
        %s315 = scalar_lea.sflag [#allocation4], %s314
        %s316 = sand.u32 %s170, 1
        %s317 = smul.addr %s316, 8
        %s318 = scalar_lea.vmem [#allocation8], %s317
        %v320 = vld [vmem:[%s272] sm:$0xff]
        %v321 = vld [vmem:[%s272 + $0x8] sm:$0xff]
        %v322 = vld [vmem:[%s272 + $0x10] sm:$0xff]
        %v323 = vld [vmem:[%s272 + $0x18] sm:$0xff]
        %v324 = vpack.c.bf16 %v320, %v320
        %v325 = vpack.c.bf16 %v321, %v321
        %v326 = vpack.c.bf16 %v322, %v322
        %v327 = vpack.c.bf16 %v323, %v323
        %v328 = vld [vmem:[#allocation7] sm:$0xf]
        %v329 = vld [vmem:[#allocation7 + $0x4] sm:$0xf]
        %v330 = vld [vmem:[#allocation7 + $0x8] sm:$0xf]
        %v331 = vld [vmem:[#allocation7 + $0xc] sm:$0xf]
        %v332 = vld [vmem:[#allocation7 + $0x10] sm:$0xf]
        %v333 = vld [vmem:[#allocation7 + $0x14] sm:$0xf]
        %v334 = vld [vmem:[#allocation7 + $0x18] sm:$0xf]
        %v335 = vld [vmem:[#allocation7 + $0x1c] sm:$0xf]
        %v336 = vld [vmem:[#allocation7 + $0x20] sm:$0xf]
        %v337 = vld [vmem:[#allocation7 + $0x24] sm:$0xf]
        %v338 = vld [vmem:[#allocation7 + $0x28] sm:$0xf]
        %v339 = vld [vmem:[#allocation7 + $0x2c] sm:$0xf]
        %v340 = vld [vmem:[#allocation7 + $0x30] sm:$0xf]
        %v341 = vld [vmem:[#allocation7 + $0x34] sm:$0xf]
        %v342 = vld [vmem:[#allocation7 + $0x38] sm:$0xf]
        %v343 = vld [vmem:[#allocation7 + $0x3c] sm:$0xf]
        %v344 = vld [vmem:[#allocation7 + $0x40] sm:$0xf]
        %v345 = vld [vmem:[#allocation7 + $0x44] sm:$0xf]
        %v346 = vld [vmem:[#allocation7 + $0x48] sm:$0xf]
        %v347 = vld [vmem:[#allocation7 + $0x4c] sm:$0xf]
        %v348 = vld [vmem:[#allocation7 + $0x50] sm:$0xf]
        %v349 = vld [vmem:[#allocation7 + $0x54] sm:$0xf]
        %v350 = vld [vmem:[#allocation7 + $0x58] sm:$0xf]
        %v351 = vld [vmem:[#allocation7 + $0x5c] sm:$0xf]
        %v352 = vld [vmem:[#allocation7 + $0x60] sm:$0xf]
        %v353 = vld [vmem:[#allocation7 + $0x64] sm:$0xf]
        %v354 = vld [vmem:[#allocation7 + $0x68] sm:$0xf]
        %v355 = vld [vmem:[#allocation7 + $0x6c] sm:$0xf]
        %v356 = vld [vmem:[#allocation7 + $0x70] sm:$0xf]
        %v357 = vld [vmem:[#allocation7 + $0x74] sm:$0xf]
        %v358 = vld [vmem:[#allocation7 + $0x78] sm:$0xf]
        %v359 = vld [vmem:[#allocation7 + $0x7c] sm:$0xf]
        %v360 = vld [vmem:[#allocation7 + $0x80] sm:$0xf]
        %v361 = vld [vmem:[#allocation7 + $0x84] sm:$0xf]
        %v362 = vld [vmem:[#allocation7 + $0x88] sm:$0xf]
        %v363 = vld [vmem:[#allocation7 + $0x8c] sm:$0xf]
        %v364 = vld [vmem:[#allocation7 + $0x90] sm:$0xf]
        %v365 = vld [vmem:[#allocation7 + $0x94] sm:$0xf]
        %v366 = vld [vmem:[#allocation7 + $0x98] sm:$0xf]
        %v367 = vld [vmem:[#allocation7 + $0x9c] sm:$0xf]
        %v368 = vld [vmem:[#allocation7 + $0xa0] sm:$0xf]
        %v369 = vld [vmem:[#allocation7 + $0xa4] sm:$0xf]
        %v370 = vld [vmem:[#allocation7 + $0xa8] sm:$0xf]
        %v371 = vld [vmem:[#allocation7 + $0xac] sm:$0xf]
        %v372 = vld [vmem:[#allocation7 + $0xb0] sm:$0xf]
        %v373 = vld [vmem:[#allocation7 + $0xb4] sm:$0xf]
        %v374 = vld [vmem:[#allocation7 + $0xb8] sm:$0xf]
        %v375 = vld [vmem:[#allocation7 + $0xbc] sm:$0xf]
        %v376 = vld [vmem:[#allocation7 + $0xc0] sm:$0xf]
        %v377 = vld [vmem:[#allocation7 + $0xc4] sm:$0xf]
        %v378 = vld [vmem:[#allocation7 + $0xc8] sm:$0xf]
        %v379 = vld [vmem:[#allocation7 + $0xcc] sm:$0xf]
        %v380 = vld [vmem:[#allocation7 + $0xd0] sm:$0xf]
        %v381 = vld [vmem:[#allocation7 + $0xd4] sm:$0xf]
        %v382 = vld [vmem:[#allocation7 + $0xd8] sm:$0xf]
        %v383 = vld [vmem:[#allocation7 + $0xdc] sm:$0xf]
        %v384 = vld [vmem:[#allocation7 + $0xe0] sm:$0xf]
        %v385 = vld [vmem:[#allocation7 + $0xe4] sm:$0xf]
        %v386 = vld [vmem:[#allocation7 + $0xe8] sm:$0xf]
        %v387 = vld [vmem:[#allocation7 + $0xec] sm:$0xf]
        %v388 = vld [vmem:[#allocation7 + $0xf0] sm:$0xf]
        %v389 = vld [vmem:[#allocation7 + $0xf4] sm:$0xf]
        %v390 = vld [vmem:[#allocation7 + $0xf8] sm:$0xf]
        %v391 = vld [vmem:[#allocation7 + $0xfc] sm:$0xf]
        %v392 = vld [vmem:[%s3] sm:$0x1]
        %v394 = vlaneseq
        %v395 = vshrl.u32 %v394, 7
        %v396 = vsub.s32 0, %v395
        %v397 = vrot.slane %v392, %v396
        %v463 = vunpack.c.l.b16 %v328
        %v464 = vunpack.c.l.b16 %v329
        %v465 = vunpack.c.l.b16 %v330
        %v466 = vunpack.c.l.b16 %v331
        %v467 = vunpack.c.l.b16 %v332
        %v468 = vunpack.c.l.b16 %v333
        %v469 = vunpack.c.l.b16 %v334
        %v470 = vunpack.c.l.b16 %v335
        %v471 = vunpack.c.l.b16 %v336
        %v472 = vunpack.c.l.b16 %v337
        %v473 = vunpack.c.l.b16 %v338
        %v474 = vunpack.c.l.b16 %v339
        %v475 = vunpack.c.l.b16 %v340
        %v476 = vunpack.c.l.b16 %v341
        %v477 = vunpack.c.l.b16 %v342
        %v478 = vunpack.c.l.b16 %v343
        %v479 = vunpack.c.l.b16 %v344
        %v480 = vunpack.c.l.b16 %v345
        %v481 = vunpack.c.l.b16 %v346
        %v482 = vunpack.c.l.b16 %v347
        %v483 = vunpack.c.l.b16 %v348
        %v484 = vunpack.c.l.b16 %v349
        %v485 = vunpack.c.l.b16 %v350
        %v486 = vunpack.c.l.b16 %v351
        %v487 = vunpack.c.l.b16 %v352
        %v488 = vunpack.c.l.b16 %v353
        %v489 = vunpack.c.l.b16 %v354
        %v490 = vunpack.c.l.b16 %v355
        %v491 = vunpack.c.l.b16 %v356
        %v492 = vunpack.c.l.b16 %v357
        %v493 = vunpack.c.l.b16 %v358
        %v494 = vunpack.c.l.b16 %v359
        %v495 = vunpack.c.l.b16 %v360
        %v496 = vunpack.c.l.b16 %v361
        %v497 = vunpack.c.l.b16 %v362
        %v498 = vunpack.c.l.b16 %v363
        %v499 = vunpack.c.l.b16 %v364
        %v500 = vunpack.c.l.b16 %v365
        %v501 = vunpack.c.l.b16 %v366
        %v502 = vunpack.c.l.b16 %v367
        %v503 = vunpack.c.l.b16 %v368
        %v504 = vunpack.c.l.b16 %v369
        %v505 = vunpack.c.l.b16 %v370
        %v506 = vunpack.c.l.b16 %v371
        %v507 = vunpack.c.l.b16 %v372
        %v508 = vunpack.c.l.b16 %v373
        %v509 = vunpack.c.l.b16 %v374
        %v510 = vunpack.c.l.b16 %v375
        %v511 = vunpack.c.l.b16 %v376
        %v512 = vunpack.c.l.b16 %v377
        %v513 = vunpack.c.l.b16 %v378
        %v514 = vunpack.c.l.b16 %v379
        %v515 = vunpack.c.l.b16 %v380
        %v516 = vunpack.c.l.b16 %v381
        %v517 = vunpack.c.l.b16 %v382
        %v518 = vunpack.c.l.b16 %v383
        %v519 = vunpack.c.l.b16 %v384
        %v520 = vunpack.c.l.b16 %v385
        %v521 = vunpack.c.l.b16 %v386
        %v522 = vunpack.c.l.b16 %v387
        %v523 = vunpack.c.l.b16 %v388
        %v524 = vunpack.c.l.b16 %v389
        %v525 = vunpack.c.l.b16 %v390
        %v526 = vunpack.c.l.b16 %v391
        %v527 = vpack.c.b16 %v464, %v463
        %v528 = vpack.c.b16 %v466, %v465
        %v529 = vpack.c.b16 %v468, %v467
        %v530 = vpack.c.b16 %v470, %v469
        %v531 = vpack.c.b16 %v472, %v471
        %v532 = vpack.c.b16 %v474, %v473
        %v533 = vpack.c.b16 %v476, %v475
        %v534 = vpack.c.b16 %v478, %v477
        %v535 = vpack.c.b16 %v480, %v479
        %v536 = vpack.c.b16 %v482, %v481
        %v537 = vpack.c.b16 %v484, %v483
        %v538 = vpack.c.b16 %v486, %v485
        %v539 = vpack.c.b16 %v488, %v487
        %v540 = vpack.c.b16 %v490, %v489
        %v541 = vpack.c.b16 %v492, %v491
        %v542 = vpack.c.b16 %v494, %v493
        %v543 = vpack.c.b16 %v496, %v495
        %v544 = vpack.c.b16 %v498, %v497
        %v545 = vpack.c.b16 %v500, %v499
        %v546 = vpack.c.b16 %v502, %v501
        %v547 = vpack.c.b16 %v504, %v503
        %v548 = vpack.c.b16 %v506, %v505
        %v549 = vpack.c.b16 %v508, %v507
        %v550 = vpack.c.b16 %v510, %v509
        %v551 = vpack.c.b16 %v512, %v511
        %v552 = vpack.c.b16 %v514, %v513
        %v553 = vpack.c.b16 %v516, %v515
        %v554 = vpack.c.b16 %v518, %v517
        %v555 = vpack.c.b16 %v520, %v519
        %v556 = vpack.c.b16 %v522, %v521
        %v557 = vpack.c.b16 %v524, %v523
        %v558 = vpack.c.b16 %v526, %v525
        %591 = vmatprep.subr.bf16.mxu0 0
        %592 = vmatpush1.bf16.msra.mxu0 %v527
        %593 = vmatprep.subr.bf16.mxu0 0
        %594 = vmatpush1.bf16.msra.mxu0 %v528
        %595 = vmatprep.subr.bf16.mxu0 0
        %596 = vmatpush1.bf16.msra.mxu0 %v529
        %597 = vmatprep.subr.bf16.mxu0 0
        %598 = vmatpush1.bf16.msra.mxu0 %v530
        %599 = vmatprep.subr.bf16.mxu0 0
        %600 = vmatpush1.bf16.msra.mxu0 %v531
        %601 = vmatprep.subr.bf16.mxu0 0
        %602 = vmatpush1.bf16.msra.mxu0 %v532
        %603 = vmatprep.subr.bf16.mxu0 0
        %604 = vmatpush1.bf16.msra.mxu0 %v533
        %605 = vmatprep.subr.bf16.mxu0 0
        %606 = vmatpush1.bf16.msra.mxu0 %v534
        %607 = vmatprep.subr.bf16.mxu0 0
        %608 = vmatpush1.bf16.msra.mxu0 %v535
        %609 = vmatprep.subr.bf16.mxu0 0
        %610 = vmatpush1.bf16.msra.mxu0 %v536
        %611 = vmatprep.subr.bf16.mxu0 0
        %612 = vmatpush1.bf16.msra.mxu0 %v537
        %613 = vmatprep.subr.bf16.mxu0 0
        %614 = vmatpush1.bf16.msra.mxu0 %v538
        %615 = vmatprep.subr.bf16.mxu0 0
        %616 = vmatpush1.bf16.msra.mxu0 %v539
        %617 = vmatprep.subr.bf16.mxu0 0
        %618 = vmatpush1.bf16.msra.mxu0 %v540
        %619 = vmatprep.subr.bf16.mxu0 0
        %620 = vmatpush1.bf16.msra.mxu0 %v541
        %621 = vmatprep.subr.bf16.mxu0 0
        %622 = vmatpush1.bf16.msra.mxu0 %v542
        %623 = vmatprep.mubr.bf16.mxu0 %v325
        %624 = vmatmul.mubr.bf16.gmra.mrb[0].mxu0 %v324
        %v625 = vpop.f32.mrb[0].mxu0
        %v626 = vadd.f32 %v397, %v625
        %v627 = vpop.f32.mrb[0].mxu0
        %v628 = vpop.f32.mrb[0].mxu0
        %v629 = vpop.f32.mrb[0].mxu0
        %630 = vdwg.mxu0
        %631 = vmatprep.subr.bf16.mxu0 0
        %632 = vmatpush1.bf16.msra.mxu0 %v543
        %633 = vmatprep.subr.bf16.mxu0 0
        %634 = vmatpush1.bf16.msra.mxu0 %v544
        %635 = vmatprep.subr.bf16.mxu0 0
        %636 = vmatpush1.bf16.msra.mxu0 %v545
        %637 = vmatprep.subr.bf16.mxu0 0
        %638 = vmatpush1.bf16.msra.mxu0 %v546
        %639 = vmatprep.subr.bf16.mxu0 0
        %640 = vmatpush1.bf16.msra.mxu0 %v547
        %641 = vmatprep.subr.bf16.mxu0 0
        %642 = vmatpush1.bf16.msra.mxu0 %v548
        %643 = vmatprep.subr.bf16.mxu0 0
        %644 = vmatpush1.bf16.msra.mxu0 %v549
        %645 = vmatprep.subr.bf16.mxu0 0
        %646 = vmatpush1.bf16.msra.mxu0 %v550
        %647 = vmatprep.subr.bf16.mxu0 0
        %648 = vmatpush1.bf16.msra.mxu0 %v551
        %649 = vmatprep.subr.bf16.mxu0 0
        %650 = vmatpush1.bf16.msra.mxu0 %v552
        %651 = vmatprep.subr.bf16.mxu0 0
        %652 = vmatpush1.bf16.msra.mxu0 %v553
        %653 = vmatprep.subr.bf16.mxu0 0
        %654 = vmatpush1.bf16.msra.mxu0 %v554
        %655 = vmatprep.subr.bf16.mxu0 0
        %656 = vmatpush1.bf16.msra.mxu0 %v555
        %657 = vmatprep.subr.bf16.mxu0 0
        %658 = vmatpush1.bf16.msra.mxu0 %v556
        %659 = vmatprep.subr.bf16.mxu0 0
        %660 = vmatpush1.bf16.msra.mxu0 %v557
        %661 = vmatprep.subr.bf16.mxu0 0
        %662 = vmatpush1.bf16.msra.mxu0 %v558
        %663 = vmatprep.mubr.bf16.mxu0 %v327
        %664 = vmatmul.mubr.bf16.gmra.mrb[0].mxu0 %v326
        %v665 = vpop.f32.mrb[0].mxu0
        %v666 = vadd.f32 %v626, %v665
        %v667 = vpop.f32.mrb[0].mxu0
        %v668 = vpop.f32.mrb[0].mxu0
        %v669 = vpop.f32.mrb[0].mxu0
        %670 = vdwg.mxu0
        %v671 = vld [vmem:[%s281] sm:$0xff]
        %v672 = vadd.f32 %v666, %v671
        %v673 = vld [vmem:[%s4] sm:$0x1]
        %v674 = vld [vmem:[%s5] sm:$0x1]
        %675 = vadd.xlane.f32.xlu0 %v672
        %v676 = vpop.xlane.xlu0 %675
        %v677 = vmul.f32 %v676, 0.0078125
        %v678 = vmul.f32 %v672, %v672
        %679 = vadd.xlane.f32.xlu0 %v678
        %v680 = vpop.xlane.xlu0 %679
        %v681 = vmul.f32 %v680, 0.0078125
        %v682 = vmul.f32 %v677, %v677
        %v683 = vsub.f32 %v681, %v682
        %v684 = vmax.f32 %v683, 0.0
        %v685 = vsub.f32 %v672, %v677
        %v686 = vadd.f32 %v684, 1e-12
        %v687 = vrsqrt.pop %v686
        %v688 = vmul.f32 %v685, %v687
        %v690 = vlaneseq
        %v691 = vshrl.u32 %v690, 7
        %v692 = vsub.s32 0, %v691
        %v693 = vrot.slane %v673, %v692
        %v695 = vmul.f32 %v688, %v693
        %v697 = vlaneseq
        %v698 = vshrl.u32 %v697, 7
        %v699 = vsub.s32 0, %v698
        %v700 = vrot.slane %v674, %v699
        %v702 = vadd.f32 %v695, %v700
        %703 = vst [vmem:[%s318] sm:$0xff] %v702
        %s704 = sand.u32 %s170, 1
        %s705 = scalar_lea.sflag [#allocation4], %s704
        %s706 = sand.u32 %s170, 1
        %s707 = smul.addr %s706, 8
        %s708 = scalar_lea.vmem [#allocation8], %s707
        // Predicated region
        $region57: #{tpu_custom_call.1} parent=43 // pred_check
          %p709 = pneg %p180
        $region58: #{tpu_custom_call.1} parent=43 // pred_check_branch
          %711 = sbr.rel (%p709) target = $region60
        $region59: #{tpu_custom_call.1} parent=43 // pred_region
          %s713 = ssub.s32 128, 128
          %714 = vsyncadd %s705, %s713
          %s715 = smul.addr %s26, 128
          %s716 = scalar_lea.hbm %s6, %s715
          %s718 = sshll.u32 %s708, 4
          %s719 = int_to_ptr.vmem [resolvable:$true] %s718
          %721 = dma.vmem_to_hbm [thread:$0]  %s719, 128, %s716, %s705
        $region60: #{tpu_custom_call.1} parent=43 // pred_fallthru
          _
      $region44: #{tpu_custom_call.1} parent=5 // pred_fallthru
        _
      %p722 = scmp.le.s32.totalorder 2, %s21
      // Predicated region
      $region61: #{tpu_custom_call.1} parent=5 // pred_check
        %p723 = pneg %p722
      $region62: #{tpu_custom_call.1} parent=5 // pred_check_branch
        %725 = sbr.rel (%p723) target = $region64
      $region63: #{tpu_custom_call.1} parent=5 // pred_region
        %s726 = ssub.s32 %s21, 2
        // Predicated region
        $region65: #{tpu_custom_call.1} parent=63 // pred_check
          %p727 = pneg %p186
        $region66: #{tpu_custom_call.1} parent=63 // pred_check_branch
          %729 = sbr.rel (%p727) target = $region68
        $region67: #{tpu_custom_call.1} parent=63 // pred_region
          %s730 = sand.u32 %s171, 1
          %s731 = scalar_lea.sflag [#allocation4], %s730
          %s732 = sand.u32 %s171, 1
          %s733 = smul.addr %s732, 8
          %s734 = scalar_lea.vmem [#allocation8], %s733
          %735 = dma.done %s731, 128
        $region68: #{tpu_custom_call.1} parent=63 // pred_fallthru
          _
      $region64: #{tpu_custom_call.1} parent=5 // pred_fallthru
        _
    $region6: #{tpu_custom_call.1} parent=1 // loop_footer
      %s25 = sadd.s32 1, %s21
    $region7: #{tpu_custom_call.1} parent=1 // loop_footer_branch
      %20 = sbr.rel target = $region3
    $region8: #{tpu_custom_call.1} parent=1 // loop_exit
      _
    %736 = vsyncpa [#allocation3], 1
    %s737 = scalar_lea.sflag [#allocation3], 1
    %738 = vsyncpa %s737, 1
    %739 = vsyncpa [#allocation6], 1
    %s740 = scalar_lea.sflag [#allocation6], 1
    %741 = vsyncpa %s740, 1
    %742 = vsyncpa [#allocation4], 1
    %s743 = scalar_lea.sflag [#allocation4], 1
    %744 = vsyncpa %s743, 1

// kernel: tpu_custom_call.1
$region0: #{tpu_custom_call.1}
  #allocation0 [shape = 'u32[]', space=smem, size = 0x4, offset = 0x4, fixed_abs, tag = 'smem constant byte address 0x4 - core index']
  #allocation1 [shape = 'u32[144,128]{1,0:T(1,128)}', space=vmem, size = 0x12000, scoped, tag = 'internal scratch']
  %s0 = inlined_call_operand.hbm [shape: f32[16,512], index: 0, kind: input, shape index: {}]
  %s1 = inlined_call_operand.hbm [shape: f32[16,128], index: 1, kind: input, shape index: {}]
  %s2 = inlined_call_operand.hbm [shape: bf16[512,128], index: 2, kind: input, shape index: {}]
  %s3 = inlined_call_operand.vmem [shape: f32[1,128], index: 3, kind: input, shape index: {}]
  %s4 = inlined_call_operand.vmem [shape: f32[1,128], index: 4, kind: input, shape index: {}]
  %s5 = inlined_call_operand.vmem [shape: f32[1,128], index: 5, kind: input, shape index: {}]
  %s6 = inlined_call_operand.hbm [shape: f32[16,128], index: 6, kind: output, shape index: {}]
  %s7 = sld [smem:[#allocation0]]
  $region69: #{tpu_custom_call.1} parent=0
    _
  %s9 = ssub.s32 1, %s7
  %s10 = scalar_select 0, %s9, %s7
  $region1: #{tpu_custom_call.1} parent=0
    #allocation2 [shape = 'u8[32768]{0}', space=vmem, size = 0x8000, scoped, tag = 'input window, operand 0']
    #allocation3 [shape = 's32[2]{0}', space=sflag, size = 0x8, scoped, tag = 'scoped memory for tpu_custom_call.1']
    #allocation4 [shape = 's32[2]{0}', space=sflag, size = 0x8, scoped, tag = 'scoped memory for tpu_custom_call.1']
    #allocation5 [shape = 'u8[8192]{0}', space=vmem, size = 0x2000, scoped, tag = 'input window, operand 1']
    #allocation6 [shape = 's32[2]{0}', space=sflag, size = 0x8, scoped, tag = 'scoped memory for tpu_custom_call.1']
    #allocation7 [shape = 'u8[131072]{0}', space=vmem, size = 0x20000, scoped, tag = 'input window, operand 2, single buffered']
    #allocation8 [shape = 'u8[8192]{0}', space=vmem, size = 0x2000, scoped, tag = 'output window, operand 0']
    %11 = vsyncpa [#allocation3], 0
    %s12 = scalar_lea.sflag [#allocation3], 1
    %13 = vsyncpa %s12, 0
    %14 = vsyncpa [#allocation6], 0
    %s15 = scalar_lea.sflag [#allocation6], 1
    %16 = vsyncpa %s15, 0
    %17 = vsyncpa [#allocation4], 0
    %s18 = scalar_lea.sflag [#allocation4], 1
    %19 = vsyncpa %s18, 0
    loop: start=0, step=1, limit=4
    $region2: #{tpu_custom_call.1} parent=1 // loop_pre_header
      _
    $region3: #{tpu_custom_call.1} parent=1 // loop_header
      %s21 = sphi 0, %s25
      %p22 = scmp.ge.s32.totalorder %s21, 4
      %s31 = sphi 0, %s33
      %s34 = sphi 0, %s31
      %s35 = sphi 0, %s34
      %s51 = sphi 0, %s35
      %s57 = sphi 0, %s59
      %s60 = sphi 0, %s57
      %s61 = sphi 0, %s60
      %s77 = sphi 0, %s61
      %s81 = sphi 0, %s81
      %s83 = sphi 0, %s81
      %s84 = sphi 0, %s83
      %s98 = sphi 0, %s84
      %s102 = sphi 0, %s102
      %s104 = sphi 0, %s102
      %s105 = sphi 0, %s104
      %s119 = sphi 0, %s105
      %s123 = sphi 0, %s123
      %s125 = sphi 0, %s123
      %s126 = sphi 0, %s125
      %s140 = sphi 0, %s126
      %s144 = sphi 0, %s144
      %s146 = sphi 0, %s144
      %s147 = sphi 0, %s146
      %s161 = sphi 0, %s147
      %s167 = sphi 0, %s169
      %s170 = sphi 0, %s167
      %s171 = sphi 0, %s170
      %s187 = sphi 0, %s171
    $region4: #{tpu_custom_call.1} parent=1 // loop_header_branch
      %24 = sbr.rel (%p22) target = $region8
    $region5: #{tpu_custom_call.1} parent=1 // loop_body
      %s26 = ssub.s32 %s21, 1
      %s27 = ssub.s32 %s21, 2
      %s28 = sadd.s32 %s21, 1
      %s29 = ssub.s32 %s21, %s28
      %p30 = scmp.eq.s32.totalorder %s29, 0
      %s32 = sadd.s32 %s31, 1
      %s33 = scalar_select %p30, %s31, %s32
      %p36 = pneg %p30
      %p37 = scmp.eq.s32.totalorder %s21, 1
      %p38 = por %p36, %p37
      %p39 = scmp.ne.s32.totalorder %s31, %s34
      %p40 = scmp.eq.s32.totalorder %s21, 0
      %p41 = por %p39, %p40
      %p42 = scmp.ne.s32.totalorder %s31, %s34
      %p43 = scmp.eq.s32.totalorder %s26, 1
      %p44 = por %p42, %p43
      %p45 = scmp.ne.s32.totalorder %s34, %s35
      %p46 = scmp.eq.s32.totalorder %s26, 0
      %p47 = por %p45, %p46
      %p48 = scmp.ne.s32.totalorder %s34, %s35
      %p49 = scmp.eq.s32.totalorder %s27, 1
      %p50 = por %p48, %p49
      %p52 = scmp.ne.s32.totalorder %s35, %s51
      %p53 = scmp.eq.s32.totalorder %s27, 0
      %p54 = por %p52, %p53
      %s55 = ssub.s32 %s21, %s28
      %p56 = scmp.eq.s32.totalorder %s55, 0
      %s58 = sadd.s32 %s57, 1
      %s59 = scalar_select %p56, %s57, %s58
      %p62 = pneg %p56
      %p63 = scmp.eq.s32.totalorder %s21, 1
      %p64 = por %p62, %p63
      %p65 = scmp.ne.s32.totalorder %s57, %s60
      %p66 = scmp.eq.s32.totalorder %s21, 0
      %p67 = por %p65, %p66
      %p68 = scmp.ne.s32.totalorder %s57, %s60
      %p69 = scmp.eq.s32.totalorder %s26, 1
      %p70 = por %p68, %p69
      %p71 = scmp.ne.s32.totalorder %s60, %s61
      %p72 = scmp.eq.s32.totalorder %s26, 0
      %p73 = por %p71, %p72
      %p74 = scmp.ne.s32.totalorder %s60, %s61
      %p75 = scmp.eq.s32.totalorder %s27, 1
      %p76 = por %p74, %p75
      %p78 = scmp.ne.s32.totalorder %s61, %s77
      %p79 = scmp.eq.s32.totalorder %s27, 0
      %p80 = por %p78, %p79
      %s82 = sadd.s32 %s81, 1
      %p85 = scmp.eq.s32.totalorder %s21, 1
      %p86 = scmp.ne.s32.totalorder %s81, %s83
      %p87 = scmp.eq.s32.totalorder %s21, 0
      %p88 = por %p86, %p87
      %p89 = scmp.ne.s32.totalorder %s81, %s83
      %p90 = scmp.eq.s32.totalorder %s26, 1
      %p91 = por %p89, %p90
      %p92 = scmp.ne.s32.totalorder %s83, %s84
      %p93 = scmp.eq.s32.totalorder %s26, 0
      %p94 = por %p92, %p93
      %p95 = scmp.ne.s32.totalorder %s83, %s84
      %p96 = scmp.eq.s32.totalorder %s27, 1
      %p97 = por %p95, %p96
      %p99 = scmp.ne.s32.totalorder %s84, %s98
      %p100 = scmp.eq.s32.totalorder %s27, 0
      %p101 = por %p99, %p100
      %s103 = sadd.s32 %s102, 1
      %p106 = scmp.eq.s32.totalorder %s21, 1
      %p107 = scmp.ne.s32.totalorder %s102, %s104
      %p108 = scmp.eq.s32.totalorder %s21, 0
      %p109 = por %p107, %p108
      %p110 = scmp.ne.s32.totalorder %s102, %s104
      %p111 = scmp.eq.s32.totalorder %s26, 1
      %p112 = por %p110, %p111
      %p113 = scmp.ne.s32.totalorder %s104, %s105
      %p114 = scmp.eq.s32.totalorder %s26, 0
      %p115 = por %p113, %p114
      %p116 = scmp.ne.s32.totalorder %s104, %s105
      %p117 = scmp.eq.s32.totalorder %s27, 1
      %p118 = por %p116, %p117
      %p120 = scmp.ne.s32.totalorder %s105, %s119
      %p121 = scmp.eq.s32.totalorder %s27, 0
      %p122 = por %p120, %p121
      %s124 = sadd.s32 %s123, 1
      %p127 = scmp.eq.s32.totalorder %s21, 1
      %p128 = scmp.ne.s32.totalorder %s123, %s125
      %p129 = scmp.eq.s32.totalorder %s21, 0
      %p130 = por %p128, %p129
      %p131 = scmp.ne.s32.totalorder %s123, %s125
      %p132 = scmp.eq.s32.totalorder %s26, 1
      %p133 = por %p131, %p132
      %p134 = scmp.ne.s32.totalorder %s125, %s126
      %p135 = scmp.eq.s32.totalorder %s26, 0
      %p136 = por %p134, %p135
      %p137 = scmp.ne.s32.totalorder %s125, %s126
      %p138 = scmp.eq.s32.totalorder %s27, 1
      %p139 = por %p137, %p138
      %p141 = scmp.ne.s32.totalorder %s126, %s140
      %p142 = scmp.eq.s32.totalorder %s27, 0
      %p143 = por %p141, %p142
      %s145 = sadd.s32 %s144, 1
      %p148 = scmp.eq.s32.totalorder %s21, 1
      %p149 = scmp.ne.s32.totalorder %s144, %s146
      %p150 = scmp.eq.s32.totalorder %s21, 0
      %p151 = por %p149, %p150
      %p152 = scmp.ne.s32.totalorder %s144, %s146
      %p153 = scmp.eq.s32.totalorder %s26, 1
      %p154 = por %p152, %p153
      %p155 = scmp.ne.s32.totalorder %s146, %s147
      %p156 = scmp.eq.s32.totalorder %s26, 0
      %p157 = por %p155, %p156
      %p158 = scmp.ne.s32.totalorder %s146, %s147
      %p159 = scmp.eq.s32.totalorder %s27, 1
      %p160 = por %p158, %p159
      %p162 = scmp.ne.s32.totalorder %s147, %s161
      %p163 = scmp.eq.s32.totalorder %s27, 0
      %p164 = por %p162, %p163
      %s165 = ssub.s32 %s21, %s28
      %p166 = scmp.eq.s32.totalorder %s165, 0
      %s168 = sadd.s32 %s167, 1
      %s169 = scalar_select %p166, %s167, %s168
      %p172 = pneg %p166
      %p173 = scmp.eq.s32.totalorder %s21, 1
      %p174 = por %p172, %p173
      %p175 = scmp.ne.s32.totalorder %s167, %s170
      %p176 = scmp.eq.s32.totalorder %s21, 0
      %p177 = por %p175, %p176
      %p178 = scmp.ne.s32.totalorder %s167, %s170
      %p179 = scmp.eq.s32.totalorder %s26, 1
      %p180 = por %p178, %p179
      %p181 = scmp.ne.s32.totalorder %s170, %s171
      %p182 = scmp.eq.s32.totalorder %s26, 0
      %p183 = por %p181, %p182
      %p184 = scmp.ne.s32.totalorder %s170, %s171
      %p185 = scmp.eq.s32.totalorder %s27, 1
      %p186 = por %p184, %p185
      %p188 = scmp.ne.s32.totalorder %s171, %s187
      %p189 = scmp.eq.s32.totalorder %s27, 0
      %p190 = por %p188, %p189
      %p191 = scmp.le.s32.totalorder 1, %s21
      %p192 = scmp.lt.s32.totalorder %s21, 3
      %p193 = pnand %p191, %p192
      %p194 = pneg %p193
      // Predicated region
      $region9: #{tpu_custom_call.1} parent=5 // pred_check
        _
      $region10: #{tpu_custom_call.1} parent=5 // pred_check_branch
        %196 = sbr.rel (%p193) target = $region12
      $region11: #{tpu_custom_call.1} parent=5 // pred_region
        %s197 = ssub.s32 %s21, 1
        // Predicated region
        $region13: #{tpu_custom_call.1} parent=11 // pred_check
          %p198 = pneg %p94
        $region14: #{tpu_custom_call.1} parent=11 // pred_check_branch
          %200 = sbr.rel (%p198) target = $region16
        $region15: #{tpu_custom_call.1} parent=11 // pred_region
          %s202 = ssub.s32 4096, 4096
          %203 = vsyncadd [#allocation6], %s202
          %s204 = sshll.u32 [#allocation7], 4
          %s205 = int_to_ptr.vmem [resolvable:$true] %s204
          %210 = dma.hbm_to_vmem [thread:$0]  %s2, 4096, %s205, [#allocation6], 64, 64, 4
        $region16: #{tpu_custom_call.1} parent=11 // pred_fallthru
          _
        // Predicated region
        $region17: #{tpu_custom_call.1} parent=11 // pred_check
          %p211 = pneg %p115
        $region18: #{tpu_custom_call.1} parent=11 // pred_check_branch
          %213 = sbr.rel (%p211) target = $region20
        $region19: #{tpu_custom_call.1} parent=11 // pred_region
          _
        $region20: #{tpu_custom_call.1} parent=11 // pred_fallthru
          _
        // Predicated region
        $region21: #{tpu_custom_call.1} parent=11 // pred_check
          %p214 = pneg %p136
        $region22: #{tpu_custom_call.1} parent=11 // pred_check_branch
          %216 = sbr.rel (%p214) target = $region24
        $region23: #{tpu_custom_call.1} parent=11 // pred_region
          _
        $region24: #{tpu_custom_call.1} parent=11 // pred_fallthru
          _
        // Predicated region
        $region25: #{tpu_custom_call.1} parent=11 // pred_check
          %p217 = pneg %p157
        $region26: #{tpu_custom_call.1} parent=11 // pred_check_branch
          %219 = sbr.rel (%p217) target = $region28
        $region27: #{tpu_custom_call.1} parent=11 // pred_region
          _
        $region28: #{tpu_custom_call.1} parent=11 // pred_fallthru
          _
      $region12: #{tpu_custom_call.1} parent=5 // pred_fallthru
        _
      %p220 = scmp.lt.s32.totalorder %s21, 2
      // Predicated region
      $region29: #{tpu_custom_call.1} parent=5 // pred_check
        %p221 = pneg %p220
      $region30: #{tpu_custom_call.1} parent=5 // pred_check_branch
        %223 = sbr.rel (%p221) target = $region32
      $region31: #{tpu_custom_call.1} parent=5 // pred_region
        // Predicated region
        $region33: #{tpu_custom_call.1} parent=31 // pred_check
          %p224 = pneg %p41
        $region34: #{tpu_custom_call.1} parent=31 // pred_check_branch
          %226 = sbr.rel (%p224) target = $region36
        $region35: #{tpu_custom_call.1} parent=31 // pred_region
          %s227 = sand.u32 %s31, 1
          %s228 = scalar_lea.sflag [#allocation3], %s227
          %s229 = sand.u32 %s31, 1
          %s230 = smul.addr %s229, 32
          %s231 = scalar_lea.vmem [#allocation2], %s230
          %s233 = ssub.s32 512, 512
          %234 = vsyncadd %s228, %s233
          %s235 = smul.addr %s21, 4
          %s236 = smul.addr %s235, 128
          %s237 = scalar_lea.hbm %s0, %s236
          %s239 = sshll.u32 %s231, 4
          %s240 = int_to_ptr.vmem [resolvable:$true] %s239
          %242 = dma.hbm_to_vmem [thread:$0]  %s237, 512, %s240, %s228
        $region36: #{tpu_custom_call.1} parent=31 // pred_fallthru
          _
        // Predicated region
        $region37: #{tpu_custom_call.1} parent=31 // pred_check
          %p243 = pneg %p67
        $region38: #{tpu_custom_call.1} parent=31 // pred_check_branch
          %245 = sbr.rel (%p243) target = $region40
        $region39: #{tpu_custom_call.1} parent=31 // pred_region
          %s246 = sand.u32 %s21, 1
          %s247 = scalar_lea.sflag [#allocation6], %s246
          %s248 = sand.u32 %s57, 1
          %s249 = smul.addr %s248, 8
          %s250 = scalar_lea.vmem [#allocation5], %s249
          %s252 = ssub.s32 128, 128
          %253 = vsyncadd %s247, %s252
          %s254 = smul.addr %s21, 128
          %s255 = scalar_lea.hbm %s1, %s254
          %s257 = sshll.u32 %s250, 4
          %s258 = int_to_ptr.vmem [resolvable:$true] %s257
          %260 = dma.hbm_to_vmem [thread:$0]  %s255, 128, %s258, %s247
        $region40: #{tpu_custom_call.1} parent=31 // pred_fallthru
          _
      $region32: #{tpu_custom_call.1} parent=5 // pred_fallthru
        _
      %p261 = scmp.le.s32.totalorder 1, %s21
      %p262 = scmp.lt.s32.totalorder %s21, 3
      %p263 = pnand %p261, %p262
      %p264 = pneg %p263
      // Predicated region
      $region41: #{tpu_custom_call.1} parent=5 // pred_check
        _
      $region42: #{tpu_custom_call.1} parent=5 // pred_check_branch
        %266 = sbr.rel (%p263) target = $region44
      $region43: #{tpu_custom_call.1} parent=5 // pred_region
        %s267 = ssub.s32 %s21, 1
        %s268 = sand.u32 %s34, 1
        %s269 = scalar_lea.sflag [#allocation3], %s268
        %s270 = sand.u32 %s34, 1
        %s271 = smul.addr %s270, 32
        %s272 = scalar_lea.vmem [#allocation2], %s271
        // Predicated region
        $region45: #{tpu_custom_call.1} parent=43 // pred_check
          %p273 = pneg %p47
        $region46: #{tpu_custom_call.1} parent=43 // pred_check_branch
          %275 = sbr.rel (%p273) target = $region48
        $region47: #{tpu_custom_call.1} parent=43 // pred_region
          %276 = dma.done %s269, 512
        $region48: #{tpu_custom_call.1} parent=43 // pred_fallthru
          _
        %s277 = sand.u32 %s26, 1
        %s278 = scalar_lea.sflag [#allocation6], %s277
        %s279 = sand.u32 %s60, 1
        %s280 = smul.addr %s279, 8
        %s281 = scalar_lea.vmem [#allocation5], %s280
        // Predicated region
        $region49: #{tpu_custom_call.1} parent=43 // pred_check
          %p282 = pneg %p73
        $region50: #{tpu_custom_call.1} parent=43 // pred_check_branch
          %284 = sbr.rel (%p282) target = $region52
        $region51: #{tpu_custom_call.1} parent=43 // pred_region
          %285 = dma.done %s278, 128
        $region52: #{tpu_custom_call.1} parent=43 // pred_fallthru
          _
        // Predicated region
        $region53: #{tpu_custom_call.1} parent=43 // pred_check
          %p286 = pneg %p94
        $region54: #{tpu_custom_call.1} parent=43 // pred_check_branch
          %288 = sbr.rel (%p286) target = $region56
        $region55: #{tpu_custom_call.1} parent=43 // pred_region
          %289 = dma.done [#allocation6], 4096
        $region56: #{tpu_custom_call.1} parent=43 // pred_fallthru
          _
        %s290 = sand.u32 %s34, 1
        %s291 = scalar_lea.sflag [#allocation3], %s290
        %s292 = sand.u32 %s34, 1
        %s293 = smul.addr %s292, 32
        %s294 = scalar_lea.vmem [#allocation2], %s293
        %p295 = pneg %p47
        %p296 = pneg %p44
        %s297 = sand.u32 %s26, 1
        %s298 = scalar_lea.sflag [#allocation6], %s297
        %s299 = sand.u32 %s60, 1
        %s300 = smul.addr %s299, 8
        %s301 = scalar_lea.vmem [#allocation5], %s300
        %p302 = pneg %p73
        %p303 = pneg %p70
        %p304 = pneg %p94
        %p305 = pneg %p91
        %p306 = pneg %p115
        %p307 = pneg %p112
        %p308 = pneg %p136
        %p309 = pneg %p133
        %p310 = pneg %p157
        %p311 = pneg %p154
        %p312 = pneg %p183
        %p313 = pneg %p180
        %s314 = sand.u32 %s170, 1
        %s315 = scalar_lea.sflag [#allocation4], %s314
        %s316 = sand.u32 %s170, 1
        %s317 = smul.addr %s316, 8
        %s318 = scalar_lea.vmem [#allocation8], %s317
        %v320 = vld [vmem:[%s272] sm:$0xff]
        %v321 = vld [vmem:[%s272 + $0x8] sm:$0xff]
        %v322 = vld [vmem:[%s272 + $0x10] sm:$0xff]
        %v323 = vld [vmem:[%s272 + $0x18] sm:$0xff]
        %v324 = vpack.c.bf16 %v320, %v320
        %v325 = vpack.c.bf16 %v321, %v321
        %v326 = vpack.c.bf16 %v322, %v322
        %v327 = vpack.c.bf16 %v323, %v323
        %v328 = vld [vmem:[#allocation7] sm:$0xf]
        %v329 = vld [vmem:[#allocation7 + $0x4] sm:$0xf]
        %v330 = vld [vmem:[#allocation7 + $0x8] sm:$0xf]
        %v331 = vld [vmem:[#allocation7 + $0xc] sm:$0xf]
        %v332 = vld [vmem:[#allocation7 + $0x10] sm:$0xf]
        %v333 = vld [vmem:[#allocation7 + $0x14] sm:$0xf]
        %v334 = vld [vmem:[#allocation7 + $0x18] sm:$0xf]
        %v335 = vld [vmem:[#allocation7 + $0x1c] sm:$0xf]
        %v336 = vld [vmem:[#allocation7 + $0x20] sm:$0xf]
        %v337 = vld [vmem:[#allocation7 + $0x24] sm:$0xf]
        %v338 = vld [vmem:[#allocation7 + $0x28] sm:$0xf]
        %v339 = vld [vmem:[#allocation7 + $0x2c] sm:$0xf]
        %v340 = vld [vmem:[#allocation7 + $0x30] sm:$0xf]
        %v341 = vld [vmem:[#allocation7 + $0x34] sm:$0xf]
        %v342 = vld [vmem:[#allocation7 + $0x38] sm:$0xf]
        %v343 = vld [vmem:[#allocation7 + $0x3c] sm:$0xf]
        %v344 = vld [vmem:[#allocation7 + $0x40] sm:$0xf]
        %v345 = vld [vmem:[#allocation7 + $0x44] sm:$0xf]
        %v346 = vld [vmem:[#allocation7 + $0x48] sm:$0xf]
        %v347 = vld [vmem:[#allocation7 + $0x4c] sm:$0xf]
        %v348 = vld [vmem:[#allocation7 + $0x50] sm:$0xf]
        %v349 = vld [vmem:[#allocation7 + $0x54] sm:$0xf]
        %v350 = vld [vmem:[#allocation7 + $0x58] sm:$0xf]
        %v351 = vld [vmem:[#allocation7 + $0x5c] sm:$0xf]
        %v352 = vld [vmem:[#allocation7 + $0x60] sm:$0xf]
        %v353 = vld [vmem:[#allocation7 + $0x64] sm:$0xf]
        %v354 = vld [vmem:[#allocation7 + $0x68] sm:$0xf]
        %v355 = vld [vmem:[#allocation7 + $0x6c] sm:$0xf]
        %v356 = vld [vmem:[#allocation7 + $0x70] sm:$0xf]
        %v357 = vld [vmem:[#allocation7 + $0x74] sm:$0xf]
        %v358 = vld [vmem:[#allocation7 + $0x78] sm:$0xf]
        %v359 = vld [vmem:[#allocation7 + $0x7c] sm:$0xf]
        %v360 = vld [vmem:[#allocation7 + $0x80] sm:$0xf]
        %v361 = vld [vmem:[#allocation7 + $0x84] sm:$0xf]
        %v362 = vld [vmem:[#allocation7 + $0x88] sm:$0xf]
        %v363 = vld [vmem:[#allocation7 + $0x8c] sm:$0xf]
        %v364 = vld [vmem:[#allocation7 + $0x90] sm:$0xf]
        %v365 = vld [vmem:[#allocation7 + $0x94] sm:$0xf]
        %v366 = vld [vmem:[#allocation7 + $0x98] sm:$0xf]
        %v367 = vld [vmem:[#allocation7 + $0x9c] sm:$0xf]
        %v368 = vld [vmem:[#allocation7 + $0xa0] sm:$0xf]
        %v369 = vld [vmem:[#allocation7 + $0xa4] sm:$0xf]
        %v370 = vld [vmem:[#allocation7 + $0xa8] sm:$0xf]
        %v371 = vld [vmem:[#allocation7 + $0xac] sm:$0xf]
        %v372 = vld [vmem:[#allocation7 + $0xb0] sm:$0xf]
        %v373 = vld [vmem:[#allocation7 + $0xb4] sm:$0xf]
        %v374 = vld [vmem:[#allocation7 + $0xb8] sm:$0xf]
        %v375 = vld [vmem:[#allocation7 + $0xbc] sm:$0xf]
        %v376 = vld [vmem:[#allocation7 + $0xc0] sm:$0xf]
        %v377 = vld [vmem:[#allocation7 + $0xc4] sm:$0xf]
        %v378 = vld [vmem:[#allocation7 + $0xc8] sm:$0xf]
        %v379 = vld [vmem:[#allocation7 + $0xcc] sm:$0xf]
        %v380 = vld [vmem:[#allocation7 + $0xd0] sm:$0xf]
        %v381 = vld [vmem:[#allocation7 + $0xd4] sm:$0xf]
        %v382 = vld [vmem:[#allocation7 + $0xd8] sm:$0xf]
        %v383 = vld [vmem:[#allocation7 + $0xdc] sm:$0xf]
        %v384 = vld [vmem:[#allocation7 + $0xe0] sm:$0xf]
        %v385 = vld [vmem:[#allocation7 + $0xe4] sm:$0xf]
        %v386 = vld [vmem:[#allocation7 + $0xe8] sm:$0xf]
        %v387 = vld [vmem:[#allocation7 + $0xec] sm:$0xf]
        %v388 = vld [vmem:[#allocation7 + $0xf0] sm:$0xf]
        %v389 = vld [vmem:[#allocation7 + $0xf4] sm:$0xf]
        %v390 = vld [vmem:[#allocation7 + $0xf8] sm:$0xf]
        %v391 = vld [vmem:[#allocation7 + $0xfc] sm:$0xf]
        %v392 = vld [vmem:[%s3] sm:$0x1]
        %v394 = vlaneseq
        %v395 = vshrl.u32 %v394, 7
        %v396 = vsub.s32 0, %v395
        %v397 = vrot.slane %v392, %v396
        %v463 = vunpack.c.l.b16 %v328
        %v464 = vunpack.c.l.b16 %v329
        %v465 = vunpack.c.l.b16 %v330
        %v466 = vunpack.c.l.b16 %v331
        %v467 = vunpack.c.l.b16 %v332
        %v468 = vunpack.c.l.b16 %v333
        %v469 = vunpack.c.l.b16 %v334
        %v470 = vunpack.c.l.b16 %v335
        %v471 = vunpack.c.l.b16 %v336
        %v472 = vunpack.c.l.b16 %v337
        %v473 = vunpack.c.l.b16 %v338
        %v474 = vunpack.c.l.b16 %v339
        %v475 = vunpack.c.l.b16 %v340
        %v476 = vunpack.c.l.b16 %v341
        %v477 = vunpack.c.l.b16 %v342
        %v478 = vunpack.c.l.b16 %v343
        %v479 = vunpack.c.l.b16 %v344
        %v480 = vunpack.c.l.b16 %v345
        %v481 = vunpack.c.l.b16 %v346
        %v482 = vunpack.c.l.b16 %v347
        %v483 = vunpack.c.l.b16 %v348
        %v484 = vunpack.c.l.b16 %v349
        %v485 = vunpack.c.l.b16 %v350
        %v486 = vunpack.c.l.b16 %v351
        %v487 = vunpack.c.l.b16 %v352
        %v488 = vunpack.c.l.b16 %v353
        %v489 = vunpack.c.l.b16 %v354
        %v490 = vunpack.c.l.b16 %v355
        %v491 = vunpack.c.l.b16 %v356
        %v492 = vunpack.c.l.b16 %v357
        %v493 = vunpack.c.l.b16 %v358
        %v494 = vunpack.c.l.b16 %v359
        %v495 = vunpack.c.l.b16 %v360
        %v496 = vunpack.c.l.b16 %v361
        %v497 = vunpack.c.l.b16 %v362
        %v498 = vunpack.c.l.b16 %v363
        %v499 = vunpack.c.l.b16 %v364
        %v500 = vunpack.c.l.b16 %v365
        %v501 = vunpack.c.l.b16 %v366
        %v502 = vunpack.c.l.b16 %v367
        %v503 = vunpack.c.l.b16 %v368
        %v504 = vunpack.c.l.b16 %v369
        %v505 = vunpack.c.l.b16 %v370
        %v506 = vunpack.c.l.b16 %v371
        %v507 = vunpack.c.l.b16 %v372
        %v508 = vunpack.c.l.b16 %v373
        %v509 = vunpack.c.l.b16 %v374
        %v510 = vunpack.c.l.b16 %v375
        %v511 = vunpack.c.l.b16 %v376
        %v512 = vunpack.c.l.b16 %v377
        %v513 = vunpack.c.l.b16 %v378
        %v514 = vunpack.c.l.b16 %v379
        %v515 = vunpack.c.l.b16 %v380
        %v516 = vunpack.c.l.b16 %v381
        %v517 = vunpack.c.l.b16 %v382
        %v518 = vunpack.c.l.b16 %v383
        %v519 = vunpack.c.l.b16 %v384
        %v520 = vunpack.c.l.b16 %v385
        %v521 = vunpack.c.l.b16 %v386
        %v522 = vunpack.c.l.b16 %v387
        %v523 = vunpack.c.l.b16 %v388
        %v524 = vunpack.c.l.b16 %v389
        %v525 = vunpack.c.l.b16 %v390
        %v526 = vunpack.c.l.b16 %v391
        %v527 = vpack.c.b16 %v464, %v463
        %v528 = vpack.c.b16 %v466, %v465
        %v529 = vpack.c.b16 %v468, %v467
        %v530 = vpack.c.b16 %v470, %v469
        %v531 = vpack.c.b16 %v472, %v471
        %v532 = vpack.c.b16 %v474, %v473
        %v533 = vpack.c.b16 %v476, %v475
        %v534 = vpack.c.b16 %v478, %v477
        %v535 = vpack.c.b16 %v480, %v479
        %v536 = vpack.c.b16 %v482, %v481
        %v537 = vpack.c.b16 %v484, %v483
        %v538 = vpack.c.b16 %v486, %v485
        %v539 = vpack.c.b16 %v488, %v487
        %v540 = vpack.c.b16 %v490, %v489
        %v541 = vpack.c.b16 %v492, %v491
        %v542 = vpack.c.b16 %v494, %v493
        %v543 = vpack.c.b16 %v496, %v495
        %v544 = vpack.c.b16 %v498, %v497
        %v545 = vpack.c.b16 %v500, %v499
        %v546 = vpack.c.b16 %v502, %v501
        %v547 = vpack.c.b16 %v504, %v503
        %v548 = vpack.c.b16 %v506, %v505
        %v549 = vpack.c.b16 %v508, %v507
        %v550 = vpack.c.b16 %v510, %v509
        %v551 = vpack.c.b16 %v512, %v511
        %v552 = vpack.c.b16 %v514, %v513
        %v553 = vpack.c.b16 %v516, %v515
        %v554 = vpack.c.b16 %v518, %v517
        %v555 = vpack.c.b16 %v520, %v519
        %v556 = vpack.c.b16 %v522, %v521
        %v557 = vpack.c.b16 %v524, %v523
        %v558 = vpack.c.b16 %v526, %v525
        %591 = vmatprep.subr.bf16.mxu0 0
        %592 = vmatpush1.bf16.msra.mxu0 %v527
        %593 = vmatprep.subr.bf16.mxu0 0
        %594 = vmatpush1.bf16.msra.mxu0 %v528
        %595 = vmatprep.subr.bf16.mxu0 0
        %596 = vmatpush1.bf16.msra.mxu0 %v529
        %597 = vmatprep.subr.bf16.mxu0 0
        %598 = vmatpush1.bf16.msra.mxu0 %v530
        %599 = vmatprep.subr.bf16.mxu0 0
        %600 = vmatpush1.bf16.msra.mxu0 %v531
        %601 = vmatprep.subr.bf16.mxu0 0
        %602 = vmatpush1.bf16.msra.mxu0 %v532
        %603 = vmatprep.subr.bf16.mxu0 0
        %604 = vmatpush1.bf16.msra.mxu0 %v533
        %605 = vmatprep.subr.bf16.mxu0 0
        %606 = vmatpush1.bf16.msra.mxu0 %v534
        %607 = vmatprep.subr.bf16.mxu0 0
        %608 = vmatpush1.bf16.msra.mxu0 %v535
        %609 = vmatprep.subr.bf16.mxu0 0
        %610 = vmatpush1.bf16.msra.mxu0 %v536
        %611 = vmatprep.subr.bf16.mxu0 0
        %612 = vmatpush1.bf16.msra.mxu0 %v537
        %613 = vmatprep.subr.bf16.mxu0 0
        %614 = vmatpush1.bf16.msra.mxu0 %v538
        %615 = vmatprep.subr.bf16.mxu0 0
        %616 = vmatpush1.bf16.msra.mxu0 %v539
        %617 = vmatprep.subr.bf16.mxu0 0
        %618 = vmatpush1.bf16.msra.mxu0 %v540
        %619 = vmatprep.subr.bf16.mxu0 0
        %620 = vmatpush1.bf16.msra.mxu0 %v541
        %621 = vmatprep.subr.bf16.mxu0 0
        %622 = vmatpush1.bf16.msra.mxu0 %v542
        %623 = vmatprep.mubr.bf16.mxu0 %v325
        %624 = vmatmul.mubr.bf16.gmra.mrb[0].mxu0 %v324
        %v625 = vpop.f32.mrb[0].mxu0
        %v626 = vadd.f32 %v397, %v625
        %v627 = vpop.f32.mrb[0].mxu0
        %v628 = vpop.f32.mrb[0].mxu0
        %v629 = vpop.f32.mrb[0].mxu0
        %630 = vdwg.mxu0
        %631 = vmatprep.subr.bf16.mxu0 0
        %632 = vmatpush1.bf16.msra.mxu0 %v543
        %633 = vmatprep.subr.bf16.mxu0 0
        %634 = vmatpush1.bf16.msra.mxu0 %v544
        %635 = vmatprep.subr.bf16.mxu0 0
        %636 = vmatpush1.bf16.msra.mxu0 %v545
        %637 = vmatprep.subr.bf16.mxu0 0
        %638 = vmatpush1.bf16.msra.mxu0 %v546
        %639 = vmatprep.subr.bf16.mxu0 0
        %640 = vmatpush1.bf16.msra.mxu0 %v547
        %641 = vmatprep.subr.bf16.mxu0 0
        %642 = vmatpush1.bf16.msra.mxu0 %v548
        %643 = vmatprep.subr.bf16.mxu0 0
        %644 = vmatpush1.bf16.msra.mxu0 %v549
        %645 = vmatprep.subr.bf16.mxu0 0
        %646 = vmatpush1.bf16.msra.mxu0 %v550
        %647 = vmatprep.subr.bf16.mxu0 0
        %648 = vmatpush1.bf16.msra.mxu0 %v551
        %649 = vmatprep.subr.bf16.mxu0 0
        %650 = vmatpush1.bf16.msra.mxu0 %v552
        %651 = vmatprep.subr.bf16.mxu0 0
        %652 = vmatpush1.bf16.msra.mxu0 %v553
        %653 = vmatprep.subr.bf16.mxu0 0
        %654 = vmatpush1.bf16.msra.mxu0 %v554
        %655 = vmatprep.subr.bf16.mxu0 0
        %656 = vmatpush1.bf16.msra.mxu0 %v555
        %657 = vmatprep.subr.bf16.mxu0 0
        %658 = vmatpush1.bf16.msra.mxu0 %v556
        %659 = vmatprep.subr.bf16.mxu0 0
        %660 = vmatpush1.bf16.msra.mxu0 %v557
        %661 = vmatprep.subr.bf16.mxu0 0
        %662 = vmatpush1.bf16.msra.mxu0 %v558
        %663 = vmatprep.mubr.bf16.mxu0 %v327
        %664 = vmatmul.mubr.bf16.gmra.mrb[0].mxu0 %v326
        %v665 = vpop.f32.mrb[0].mxu0
        %v666 = vadd.f32 %v626, %v665
        %v667 = vpop.f32.mrb[0].mxu0
        %v668 = vpop.f32.mrb[0].mxu0
        %v669 = vpop.f32.mrb[0].mxu0
        %670 = vdwg.mxu0
        %v671 = vld [vmem:[%s281] sm:$0xff]
        %v672 = vadd.f32 %v666, %v671
        %v673 = vld [vmem:[%s4] sm:$0x1]
        %v674 = vld [vmem:[%s5] sm:$0x1]
        %675 = vadd.xlane.f32.xlu0 %v672
        %v676 = vpop.xlane.xlu0 %675
        %v677 = vmul.f32 %v676, 0.0078125
        %v678 = vmul.f32 %v672, %v672
        %679 = vadd.xlane.f32.xlu0 %v678
        %v680 = vpop.xlane.xlu0 %679
        %v681 = vmul.f32 %v680, 0.0078125
        %v682 = vmul.f32 %v677, %v677
        %v683 = vsub.f32 %v681, %v682
        %v684 = vmax.f32 %v683, 0.0
        %v685 = vsub.f32 %v672, %v677
        %v686 = vadd.f32 %v684, 1e-12
        %v687 = vrsqrt.pop %v686
        %v688 = vmul.f32 %v685, %v687
        %v690 = vlaneseq
        %v691 = vshrl.u32 %v690, 7
        %v692 = vsub.s32 0, %v691
        %v693 = vrot.slane %v673, %v692
        %v695 = vmul.f32 %v688, %v693
        %v697 = vlaneseq
        %v698 = vshrl.u32 %v697, 7
        %v699 = vsub.s32 0, %v698
        %v700 = vrot.slane %v674, %v699
        %v702 = vadd.f32 %v695, %v700
        %703 = vst [vmem:[%s318] sm:$0xff] %v702
        %s704 = sand.u32 %s170, 1
        %s705 = scalar_lea.sflag [#allocation4], %s704
        %s706 = sand.u32 %s170, 1
        %s707 = smul.addr %s706, 8
        %s708 = scalar_lea.vmem [#allocation8], %s707
        // Predicated region
        $region57: #{tpu_custom_call.1} parent=43 // pred_check
          %p709 = pneg %p180
        $region58: #{tpu_custom_call.1} parent=43 // pred_check_branch
          %711 = sbr.rel (%p709) target = $region60
        $region59: #{tpu_custom_call.1} parent=43 // pred_region
          %s713 = ssub.s32 128, 128
          %714 = vsyncadd %s705, %s713
          %s715 = smul.addr %s26, 128
          %s716 = scalar_lea.hbm %s6, %s715
          %s718 = sshll.u32 %s708, 4
          %s719 = int_to_ptr.vmem [resolvable:$true] %s718
          %721 = dma.vmem_to_hbm [thread:$0]  %s719, 128, %s716, %s705
        $region60: #{tpu_custom_call.1} parent=43 // pred_fallthru
          _
      $region44: #{tpu_custom_call.1} parent=5 // pred_fallthru
        _
      %p722 = scmp.le.s32.totalorder 2, %s21
      // Predicated region
      $region61: #{tpu_custom_call.1} parent=5 // pred_check
        %p723 = pneg %p722
      $region62: #{tpu_custom_call.1} parent=5 // pred_check_branch
        %725 = sbr.rel (%p723) target = $region64
      $region63: #{tpu_custom_call.1} parent=5 // pred_region
        %s726 = ssub.s32 %s21, 2
        // Predicated region
        $region65: #{tpu_custom_call.1} parent=63 // pred_check
          %p727 = pneg %p186
        $region66: #{tpu_custom_call.1} parent=63 // pred_check_branch
          %729 = sbr.rel (%p727) target = $region68
        $region67: #{tpu_custom_call.1} parent=63 // pred_region
          %s730 = sand.u32 %s171, 1
          %s731 = scalar_lea.sflag [#allocation4], %s730
          %s732 = sand.u32 %s171, 1
          %s733 = smul.addr %s732, 8
          %s734 = scalar_lea.vmem [#allocation8], %s733
          %735 = dma.done %s731, 128
        $region68: #{tpu_custom_call.1} parent=63 // pred_fallthru
          _
      $region64: #{tpu_custom_call.1} parent=5 // pred_fallthru
        _
    $region6: #{tpu_custom_call.1} parent=1 // loop_footer
      %s25 = sadd.s32 1, %s21
    $region7: #{tpu_custom_call.1} parent=1 // loop_footer_branch
      %20 = sbr.rel target = $region3
    $region8: #{tpu_custom_call.1} parent=1 // loop_exit
      _
    %736 = vsyncpa [#allocation3], 1
    %s737 = scalar_lea.sflag [#allocation3], 1
    %738 = vsyncpa %s737, 1
    %739 = vsyncpa [#allocation6], 1
    %s740 = scalar_lea.sflag [#allocation6], 1
    %741 = vsyncpa %s740, 1
    %742 = vsyncpa [#allocation4], 1
    %s743 = scalar_lea.sflag [#allocation4], 1
    %744 = vsyncpa %s743, 1

</llo_original>
